<compile_context>
chip_gen: v7x
topology: tpu7x:2x2x1
jax: 0.10.0
libtpu: 0.0.40
codegen_flags: <defaults>
</compile_context>

<pallas_src>
import functools
import math

import jax
import jax.numpy as jnp
from jax.experimental import pallas as pl
from jax.experimental.pallas import tpu as pltpu


ACT_DTYPE = jnp.bfloat16       # HBM storage dtype for weights & activations
NEG_INF = -1e9                 # finite mask value (matches HF GPT2 behaviour)
LN_EPS = 1e-5


@functools.lru_cache(maxsize=None)
def _vmem_limit_bytes():
    """Per-generation scoped-VMEM limit: ~3/4 of physical, capped at 100 MiB.
    v5e/v6e (128 MiB physical) -> 96 MiB, v7x (64 MiB physical) -> 48 MiB."""
    try:
        cap = int(pltpu.get_tpu_info().vmem_capacity_bytes)
    except Exception:
        cap = 64 * 1024 * 1024             # conservative fallback (v7x physical)
    return min(cap * 3 // 4, 100 * 1024 * 1024)


def _pick_tile(dim, target, align=128):
    """Largest divisor of `dim` <= target that is 256-aligned (v6e/v7x MXU),
    else `align`-aligned (v5e), else the full dim."""
    if dim <= target:
        return dim
    for a in (256, align):
        t = (target // a) * a
        while t >= a:
            if dim % t == 0:
                return t
            t -= a
    return dim   # no aligned divisor -> single block (guarded by VMEM check)


def _heads_per_block(n_head, head_dim):
    """Smallest head count per attention grid step whose packed output width is
    lane-dense (multiple of 128); falls back to all heads (output width == H)."""
    for hp in range(1, n_head + 1):
        if n_head % hp == 0 and (hp * head_dim) % 128 == 0:
            return hp
    return n_head


# ----------------------------------------------------------------------------
# Fused linear: y = LN?(x) @ W + b (+ optional fused gelu, + fused residual)
# Single-K contraction; bf16 operands, fp32 accumulation.
# ----------------------------------------------------------------------------
def _linear_kernel(*refs, activation, has_ln, has_residual, ln_eps):
    it = iter(refs)
    x_ref, w_ref, b_ref = next(it), next(it), next(it)
    g_ref = next(it) if has_ln else None
    bb_ref = next(it) if has_ln else None
    res_ref = next(it) if has_residual else None
    o_ref = next(it)

    x = x_ref[...]
    if has_ln:
        # two-pass E[(x-mu)^2] in fp32 on the in-VMEM tile (numerically safe)
        xf = x.astype(jnp.float32)
        mu = jnp.mean(xf, axis=-1, keepdims=True)
        xc = xf - mu
        var = jnp.mean(xc * xc, axis=-1, keepdims=True)
        x = (xc * jax.lax.rsqrt(var + ln_eps) * g_ref[...]
             + bb_ref[...]).astype(w_ref.dtype)

    y = jnp.dot(x, w_ref[...], preferred_element_type=jnp.float32) + b_ref[...]

    if activation == "gelu_new":  # GPT2 "gelu_new" (tanh approximation), fp32
        c = math.sqrt(2.0 / math.pi)
        y = 0.5 * y * (1.0 + jnp.tanh(c * (y + 0.044715 * y * y * y)))
    if has_residual:
        y = y + res_ref[...].astype(jnp.float32)
    o_ref[...] = y.astype(o_ref.dtype)


def linear(x2d, w, b, *, activation="none", residual=None,
           ln_gamma=None, ln_beta=None, ln_eps=LN_EPS,
           tm_target=256, tn_target=256):
    """y = LN?(x2d) @ w + b (optionally fused gelu / residual).
    x2d: [M, K] bf16, w: [K, N] bf16, b: [N] fp32.  Output bf16 [M, N]."""
    M, K = x2d.shape
    N = w.shape[1]
    tm = _pick_tile(M, tm_target, align=8)   # rows only need sublane alignment
    tn = _pick_tile(N, tn_target)
    has_ln = ln_gamma is not None
    has_res = residual is not None

    # Single-K contraction: whole reduction per tile (no k grid axis, no fp32
    # accumulator scratch, no pl.when) -- always fits VMEM at GPT2 sizes and is
    # required for the fused LayerNorm prologue.
    est = (2 * (tm * K * x2d.dtype.itemsize + K * tn * w.dtype.itemsize)
           + 2 * tm * tn * x2d.dtype.itemsize * (2 + has_res))
    # TODO(synk): add a K-tiled accumulator path if K ever outgrows VMEM.
    assert est < _vmem_limit_bytes(), "linear(): single-K tile does not fit VMEM"

    in_specs = [
        pl.BlockSpec((tm, K), lambda i, j: (i, 0)),
        pl.BlockSpec((K, tn), lambda i, j: (0, j)),
        pl.BlockSpec((1, tn), lambda i, j: (0, j)),
    ]
    args = [x2d, w, b.reshape(1, N).astype(jnp.float32)]
    if has_ln:
        in_specs += [pl.BlockSpec((1, K), lambda i, j: (0, 0)),
                     pl.BlockSpec((1, K), lambda i, j: (0, 0))]
        args += [ln_gamma.reshape(1, K).astype(jnp.float32),
                 ln_beta.reshape(1, K).astype(jnp.float32)]
    if has_res:
        in_specs.append(pl.BlockSpec((tm, tn), lambda i, j: (i, j)))
        args.append(residual)

    return pl.pallas_call(
        functools.partial(_linear_kernel, activation=activation,
                          has_ln=has_ln, has_residual=has_res, ln_eps=ln_eps),
        out_shape=jax.ShapeDtypeStruct((M, N), x2d.dtype),
        grid=(M // tm, N // tn),
        in_specs=in_specs,
        out_specs=pl.BlockSpec((tm, tn), lambda i, j: (i, j)),
        compiler_params=pltpu.CompilerParams(
            dimension_semantics=("parallel", "parallel"),
            vmem_limit_bytes=_vmem_limit_bytes()),
    )(*args)


# ----------------------------------------------------------------------------
# Flash-style attention: grid (B, head-block, q-block, kv-block), online
# softmax carried in VMEM scratch across the kv axis, causal mask built from
# indices in-kernel, heads packed per step for a lane-dense output store
# straight into the (B, S, H) slab.
# ----------------------------------------------------------------------------
def _flash_attn_kernel(q_ref, k_ref, v_ref, pad_ref, o_ref,
                       m_sc, l_sc, acc_sc, *, scale, heads_per_block):
    qi = pl.program_id(2)
    kv = pl.program_id(3)
    n_kv = pl.num_programs(3)
    hp = heads_per_block
    tq = q_ref.shape[3]
    tkv = k_ref.shape[3]

    @pl.when(kv == 0)
    def _():
        m_sc[...] = jnp.full_like(m_sc, -1e30)
        l_sc[...] = jnp.zeros_like(l_sc)
        acc_sc[...] = jnp.zeros_like(acc_sc)

    # causal mask for this (q-block, kv-block) tile, built from indices
    row = jax.lax.broadcasted_iota(jnp.int32, (tq, tkv), 0) + qi * tq
    col = jax.lax.broadcasted_iota(jnp.int32, (tq, tkv), 1) + kv * tkv
    causal = col <= row
    pad = pad_ref[0]                               # (1, tkv) additive key bias

    for h in range(hp):                            # static unroll; hp is 1-2
        q = q_ref[0, 0, h]                         # (tq,  hd) bf16
        k = k_ref[0, 0, h]                         # (tkv, hd) bf16
        v = v_ref[0, 0, h]                         # (tkv, hd) bf16
        # MXU consumes k in (tkv, hd) form via the contraction dims; no XLU
        # transpose is emitted for the "K^T".
        s = jax.lax.dot_general(q, k, (((1,), (1,)), ((), ())),
                                preferred_element_type=jnp.float32) * scale
        s = jnp.where(causal, s, NEG_INF) + pad

        m_prev = m_sc[h]                           # (tq, 1)
        m_new = jnp.maximum(m_prev, jnp.max(s, axis=-1, keepdims=True))
        alpha = jnp.exp(m_prev - m_new)
        p = jnp.exp(s - m_new)
        l_sc[h] = alpha * l_sc[h] + jnp.sum(p, axis=-1, keepdims=True)
        acc_sc[h] = alpha * acc_sc[h] + jax.lax.dot_general(
            p.astype(v.dtype), v, (((1,), (0,)), ((), ())),
            preferred_element_type=jnp.float32)
        m_sc[h] = m_new

    @pl.when(kv == n_kv - 1)
    def _():
        # exact reciprocal (approx=False) for parity with the fp32 reference;
        # single full-width (hp*hd lanes) store into the (B, S, H) output.
        outs = [acc_sc[h] * pl.reciprocal(l_sc[h]) for h in range(hp)]
        o_ref[0] = jnp.concatenate(outs, axis=-1).astype(o_ref.dtype)


def attention(qkv_t, pad_bias, *, scale, heads_per_block,
              tq_target=256, tkv_target=512):
    """qkv_t: (3, B, n_head, S, head_dim) bf16; pad_bias: (B, 1, S) fp32.
    Returns (B, S, n_head*head_dim) bf16 with heads already merged."""
    _, B, nh, S, hd = qkv_t.shape
    hp = heads_per_block
    n_blk = nh // hp
    hpd = hp * hd
    H = nh * hd
    tq = _pick_tile(S, tq_target)
    tkv = _pick_tile(S, tkv_target)
    grid = (B, n_blk, S // tq, S // tkv)           # kv innermost (carried state)

    return pl.pallas_call(
        functools.partial(_flash_attn_kernel, scale=scale, heads_per_block=hp),
        out_shape=jax.ShapeDtypeStruct((B, S, H), qkv_t.dtype),
        grid=grid,
        in_specs=[
            pl.BlockSpec((1, 1, hp, tq, hd), lambda b, p, qi, kv: (0, b, p, qi, 0)),
            pl.BlockSpec((1, 1, hp, tkv, hd), lambda b, p, qi, kv: (1, b, p, kv, 0)),
            pl.BlockSpec((1, 1, hp, tkv, hd), lambda b, p, qi, kv: (2, b, p, kv, 0)),
            pl.BlockSpec((1, 1, tkv), lambda b, p, qi, kv: (b, 0, kv)),
        ],
        out_specs=pl.BlockSpec((1, tq, hpd), lambda b, p, qi, kv: (b, qi, p)),
        scratch_shapes=[pltpu.VMEM((hp, tq, 1), jnp.float32),
                        pltpu.VMEM((hp, tq, 1), jnp.float32),
                        pltpu.VMEM((hp, tq, hd), jnp.float32)],
        compiler_params=pltpu.CompilerParams(
            # b / head-block / q-block carry no state -> parallel (keeps both
            # v7x TensorCores fed); kv carries the online-softmax accumulators.
            dimension_semantics=("parallel", "parallel", "parallel", "arbitrary"),
            vmem_limit_bytes=_vmem_limit_bytes()),
    )(qkv_t, qkv_t, qkv_t, pad_bias)


# ----------------------------------------------------------------------------
# Parameter init (deterministic, synthetic weights; matmul weights in bf16)
# ----------------------------------------------------------------------------
def init_params(key, vocab_size=64, n_positions=32, hidden=32, n_layer=2,
                n_head=2, num_labels=2):
    assert hidden % n_head == 0
    keys = list(jax.random.split(key, 8 + 8 * n_layer))
    kit = iter(keys)

    def nrm(shape, std=0.02, dtype=ACT_DTYPE):
        return (jax.random.normal(next(kit), shape, jnp.float32) * std).astype(dtype)

    layers = []
    for _ in range(n_layer):
        layers.append(dict(
            ln1_g=jnp.ones((hidden,), jnp.float32),
            ln1_b=jnp.zeros((hidden,), jnp.float32),
            c_attn_w=nrm((hidden, 3 * hidden)),
            c_attn_b=jnp.zeros((3 * hidden,), jnp.float32),
            attn_proj_w=nrm((hidden, hidden)),
            attn_proj_b=jnp.zeros((hidden,), jnp.float32),
            ln2_g=jnp.ones((hidden,), jnp.float32),
            ln2_b=jnp.zeros((hidden,), jnp.float32),
            fc_w=nrm((hidden, 4 * hidden)),
            fc_b=jnp.zeros((4 * hidden,), jnp.float32),
            proj_w=nrm((4 * hidden, hidden)),
            proj_b=jnp.zeros((hidden,), jnp.float32),
        ))

    return dict(
        wte=nrm((vocab_size, hidden)),
        wpe=nrm((n_positions, hidden), std=0.01),
        layers=layers,
        lnf_g=jnp.ones((hidden,), jnp.float32),
        lnf_b=jnp.zeros((hidden,), jnp.float32),
        # probe head: Linear(hidden, 128) -> ReLU -> Linear(128, num_labels)
        probe1_w=nrm((hidden, 128), dtype=jnp.float32),
        probe1_b=jnp.zeros((128,), jnp.float32),
        probe2_w=nrm((128, num_labels), dtype=jnp.float32),
        probe2_b=jnp.zeros((num_labels,), jnp.float32),
    )


# ----------------------------------------------------------------------------
# Forward pass (GPT2Model -> last-token pooling -> probe head)
# ----------------------------------------------------------------------------
def gpt2_probe_forward(params, input_ids, attention_mask=None, *, n_head):
    B, S = input_ids.shape
    H = params["wte"].shape[1]
    hd = H // n_head
    scale = 1.0 / math.sqrt(hd)
    hp = _heads_per_block(n_head, hd)

    # embeddings (eval mode => dropout is identity); activations flow in bf16
    h = (params["wte"][input_ids] + params["wpe"][None, :S, :]).astype(ACT_DTYPE)

    # additive padding bias along the key axis: (B, 1, S)
    if attention_mask is None:
        pad = jnp.zeros((B, 1, S), jnp.float32)
    else:
        pad = ((1.0 - attention_mask.astype(jnp.float32)) * NEG_INF).reshape(B, 1, S)

    for layer in params["layers"]:
        # --- attention block: LN1 fused into the QKV projection ---
        h2d = h.reshape(B * S, H)
        qkv = linear(h2d, layer["c_attn_w"], layer["c_attn_b"],
                     ln_gamma=layer["ln1_g"], ln_beta=layer["ln1_b"])    # (B*S, 3H)
        # Single relayout pass to the attention-friendly layout; the
        # merge-heads transpose after attention is gone entirely (the kernel
        # writes straight into (B, S, H)).
        # TODO(synk): fold this split-heads relayout into the QKV linear's
        # output BlockSpec (write tn==hp*hd column blocks straight into
        # (3, B, nh, S, hd) slabs); valid whenever hp*hd % 128 == 0, i.e. for
        # real GPT2 (head_dim=64) but not for this tiny smoke-test config.
        qkv_t = qkv.reshape(B, S, 3, n_head, hd).transpose(2, 0, 3, 1, 4)
        a = attention(qkv_t, pad, scale=scale, heads_per_block=hp)       # (B, S, H)
        # output projection with the residual add fused into the epilogue
        h = linear(a.reshape(B * S, H), layer["attn_proj_w"], layer["attn_proj_b"],
                   residual=h2d).reshape(B, S, H)

        # --- MLP block: LN2 + GELU fused into the fc matmul ---
        h2d = h.reshape(B * S, H)
        m = linear(h2d, layer["fc_w"], layer["fc_b"], activation="gelu_new",
                   ln_gamma=layer["ln2_g"], ln_beta=layer["ln2_b"])
        h = linear(m, layer["proj_w"], layer["proj_b"],
                   residual=h2d).reshape(B, S, H)

    # Only the last token feeds the probe and LayerNorm is per-row, so
    # ln_f(h)[:, -1] == ln_f(h[:, -1]): normalize just the B pooled rows (fp32).
    pooled = h[:, -1, :].astype(jnp.float32)
    mu = jnp.mean(pooled, axis=-1, keepdims=True)
    xc = pooled - mu
    var = jnp.mean(xc * xc, axis=-1, keepdims=True)
    pooled = xc * jax.lax.rsqrt(var + LN_EPS) * params["lnf_g"] + params["lnf_b"]

    # probe head: Linear(H,128) -> ReLU -> Linear(128,num_labels). A few kFLOPs,
    # so plain jnp (two pallas_call launches would cost more than the compute).
    z = jnp.maximum(pooled @ params["probe1_w"] + params["probe1_b"], 0.0)
    logits = z @ params["probe2_w"] + params["probe2_b"]
    return logits


# ----------------------------------------------------------------------------
if __name__ == "__main__":
    key = jax.random.PRNGKey(0)
    pkey, ikey = jax.random.split(key)

    params = init_params(pkey, vocab_size=64, n_positions=32, hidden=32,
                         n_layer=2, n_head=2, num_labels=2)

    B, S = 2, 8
    input_ids = jax.random.randint(ikey, (B, S), 0, 64, dtype=jnp.int32)
    attention_mask = jnp.ones((B, S), jnp.int32)

    fwd = jax.jit(gpt2_probe_forward, static_argnames=("n_head",))
    logits = fwd(params, input_ids, attention_mask, n_head=2)
    logits = jax.block_until_ready(logits)
    assert logits.shape == (B, 2) and logits.dtype == jnp.float32
    print("KERNEL_OK")
</pallas_src>

<mosaic_0001>
module attributes {stable_mosaic.version = 11 : i64} {
  func.func @_linear_kernel(%arg0: i32, %arg1: i32, %arg2: memref<16x32xbf16, #tpu.memory_space<vmem>>, %arg3: memref<32x96xbf16, #tpu.memory_space<vmem>>, %arg4: memref<1x96xf32, #tpu.memory_space<vmem>>, %arg5: memref<1x32xf32, #tpu.memory_space<vmem>>, %arg6: memref<1x32xf32, #tpu.memory_space<vmem>>, %arg7: memref<16x96xbf16, #tpu.memory_space<vmem>>) attributes {dimension_semantics = [#tpu.dimension_semantics<parallel>, #tpu.dimension_semantics<parallel>], iteration_bounds = array<i64: 1, 1>, scalar_prefetch = 0 : i64, scratch_operands = 0 : i64, tpu.core_type = #tpu.core_type<tc>, window_params = [{transform_indices = @transform_0, window_bounds = array<i64: 16, 32>}, {transform_indices = @transform_1, window_bounds = array<i64: 32, 96>}, {transform_indices = @transform_2, window_bounds = array<i64: 1, 96>}, {pipeline_mode = #tpu.pipeline_mode<synchronous>, transform_indices = @transform_3, window_bounds = array<i64: 1, 32>}, {pipeline_mode = #tpu.pipeline_mode<synchronous>, transform_indices = @transform_4, window_bounds = array<i64: 1, 32>}, {transform_indices = @transform_5, window_bounds = array<i64: 16, 96>}]} {
    %c0 = arith.constant 0 : index
    %c0_0 = arith.constant 0 : index
    %0 = vector.load %arg2[%c0, %c0_0] : memref<16x32xbf16, #tpu.memory_space<vmem>>, vector<16x32xbf16>
    %1 = arith.extf %0 : vector<16x32xbf16> to vector<16x32xf32>
    %cst = arith.constant dense<0.000000e+00> : vector<16xf32>
    %2 = vector.multi_reduction <add>, %1, %cst [1] : vector<16x32xf32> to vector<16xf32>
    %3 = vector.shape_cast %2 : vector<16xf32> to vector<16x1xf32>
    %cst_1 = arith.constant 3.200000e+01 : f32
    %4 = vector.broadcast %cst_1 : f32 to vector<16x1xf32>
    %5 = arith.divf %3, %4 : vector<16x1xf32>
    %6 = vector.broadcast %5 : vector<16x1xf32> to vector<16x32xf32>
    %7 = arith.subf %1, %6 : vector<16x32xf32>
    %8 = arith.mulf %7, %7 : vector<16x32xf32>
    %cst_2 = arith.constant dense<0.000000e+00> : vector<16xf32>
    %9 = vector.multi_reduction <add>, %8, %cst_2 [1] : vector<16x32xf32> to vector<16xf32>
    %10 = vector.shape_cast %9 : vector<16xf32> to vector<16x1xf32>
    %cst_3 = arith.constant 3.200000e+01 : f32
    %11 = vector.broadcast %cst_3 : f32 to vector<16x1xf32>
    %12 = arith.divf %10, %11 : vector<16x1xf32>
    %cst_4 = arith.constant 9.99999974E-6 : f32
    %13 = vector.broadcast %cst_4 : f32 to vector<16x1xf32>
    %14 = arith.addf %12, %13 : vector<16x1xf32>
    %15 = math.rsqrt %14 : vector<16x1xf32>
    %16 = vector.broadcast %15 : vector<16x1xf32> to vector<16x32xf32>
    %17 = arith.mulf %7, %16 : vector<16x32xf32>
    %c0_5 = arith.constant 0 : index
    %c0_6 = arith.constant 0 : index
    %18 = vector.load %arg5[%c0_5, %c0_6] : memref<1x32xf32, #tpu.memory_space<vmem>>, vector<1x32xf32>
    %19 = vector.broadcast %18 : vector<1x32xf32> to vector<16x32xf32>
    %20 = arith.mulf %17, %19 : vector<16x32xf32>
    %c0_7 = arith.constant 0 : index
    %c0_8 = arith.constant 0 : index
    %21 = vector.load %arg6[%c0_7, %c0_8] : memref<1x32xf32, #tpu.memory_space<vmem>>, vector<1x32xf32>
    %22 = vector.broadcast %21 : vector<1x32xf32> to vector<16x32xf32>
    %23 = arith.addf %20, %22 : vector<16x32xf32>
    %24 = arith.truncf %23 : vector<16x32xf32> to vector<16x32xbf16>
    %c0_9 = arith.constant 0 : index
    %c0_10 = arith.constant 0 : index
    %25 = vector.load %arg3[%c0_9, %c0_10] : memref<32x96xbf16, #tpu.memory_space<vmem>>, vector<32x96xbf16>
    %cst_11 = arith.constant dense<0.000000e+00> : vector<16x96xf32>
    %26 = tpu.matmul %24, %25, %cst_11 {dimension_numbers = #tpu.dot_dimension_numbers<[1], [0], [0], [1], [0, 0, 1, 1], [], []>} : vector<16x32xbf16>, vector<32x96xbf16>, vector<16x96xf32> -> vector<16x96xf32>
    %c0_12 = arith.constant 0 : index
    %c0_13 = arith.constant 0 : index
    %27 = vector.load %arg4[%c0_12, %c0_13] : memref<1x96xf32, #tpu.memory_space<vmem>>, vector<1x96xf32>
    %28 = vector.broadcast %27 : vector<1x96xf32> to vector<16x96xf32>
    %29 = arith.addf %26, %28 : vector<16x96xf32>
    %30 = arith.truncf %29 : vector<16x96xf32> to vector<16x96xbf16>
    %c0_14 = arith.constant 0 : index
    %c0_15 = arith.constant 0 : index
    %31 = vector.load %arg7[%c0_14, %c0_15] : memref<16x96xbf16, #tpu.memory_space<vmem>>, vector<16x96xbf16>
    tpu.vector_store %arg7[%c0_14, %c0_15], %30 {strides = array<i32>} : memref<16x96xbf16, #tpu.memory_space<vmem>>, vector<16x96xbf16>,
    return
  }
  func.func @transform_0(%arg0: i32, %arg1: i32) -> (i32, i32) {
    %c0_i32 = arith.constant 0 : i32
    %c0_i32_0 = arith.constant 0 : i32
    return %arg0, %c0_i32 : i32, i32
  }
  func.func @transform_1(%arg0: i32, %arg1: i32) -> (i32, i32) {
    %c0_i32 = arith.constant 0 : i32
    %c0_i32_0 = arith.constant 0 : i32
    return %c0_i32, %arg1 : i32, i32
  }
  func.func @transform_2(%arg0: i32, %arg1: i32) -> (i32, i32) {
    %c0_i32 = arith.constant 0 : i32
    %c0_i32_0 = arith.constant 0 : i32
    return %c0_i32, %arg1 : i32, i32
  }
  func.func @transform_3(%arg0: i32, %arg1: i32) -> (i32, i32) {
    %c0_i32 = arith.constant 0 : i32
    %c0_i32_0 = arith.constant 0 : i32
    %c0_i32_1 = arith.constant 0 : i32
    return %c0_i32, %c0_i32_0 : i32, i32
  }
  func.func @transform_4(%arg0: i32, %arg1: i32) -> (i32, i32) {
    %c0_i32 = arith.constant 0 : i32
    %c0_i32_0 = arith.constant 0 : i32
    %c0_i32_1 = arith.constant 0 : i32
    return %c0_i32, %c0_i32_0 : i32, i32
  }
  func.func @transform_5(%arg0: i32, %arg1: i32) -> (i32, i32) {
    %c0_i32 = arith.constant 0 : i32
    return %arg0, %arg1 : i32, i32
  }
}

module attributes {stable_mosaic.version = 11 : i64} {
  func.func @_linear_kernel(%arg0: i32, %arg1: i32, %arg2: memref<16x32xbf16, #tpu.memory_space<vmem>>, %arg3: memref<32x32xbf16, #tpu.memory_space<vmem>>, %arg4: memref<1x32xf32, #tpu.memory_space<vmem>>, %arg5: memref<16x32xbf16, #tpu.memory_space<vmem>>, %arg6: memref<16x32xbf16, #tpu.memory_space<vmem>>) attributes {dimension_semantics = [#tpu.dimension_semantics<parallel>, #tpu.dimension_semantics<parallel>], iteration_bounds = array<i64: 1, 1>, scalar_prefetch = 0 : i64, scratch_operands = 0 : i64, tpu.core_type = #tpu.core_type<tc>, window_params = [{transform_indices = @transform_0, window_bounds = array<i64: 16, 32>}, {transform_indices = @transform_1, window_bounds = array<i64: 32, 32>}, {transform_indices = @transform_2, window_bounds = array<i64: 1, 32>}, {transform_indices = @transform_3, window_bounds = array<i64: 16, 32>}, {transform_indices = @transform_4, window_bounds = array<i64: 16, 32>}]} {
    %c0 = arith.constant 0 : index
    %c0_0 = arith.constant 0 : index
    %0 = vector.load %arg2[%c0, %c0_0] : memref<16x32xbf16, #tpu.memory_space<vmem>>, vector<16x32xbf16>
    %c0_1 = arith.constant 0 : index
    %c0_2 = arith.constant 0 : index
    %1 = vector.load %arg3[%c0_1, %c0_2] : memref<32x32xbf16, #tpu.memory_space<vmem>>, vector<32x32xbf16>
    %cst = arith.constant dense<0.000000e+00> : vector<16x32xf32>
    %2 = tpu.matmul %0, %1, %cst {dimension_numbers = #tpu.dot_dimension_numbers<[1], [0], [0], [1], [0, 0, 1, 1], [], []>} : vector<16x32xbf16>, vector<32x32xbf16>, vector<16x32xf32> -> vector<16x32xf32>
    %c0_3 = arith.constant 0 : index
    %c0_4 = arith.constant 0 : index
    %3 = vector.load %arg4[%c0_3, %c0_4] : memref<1x32xf32, #tpu.memory_space<vmem>>, vector<1x32xf32>
    %4 = vector.broadcast %3 : vector<1x32xf32> to vector<16x32xf32>
    %5 = arith.addf %2, %4 : vector<16x32xf32>
    %c0_5 = arith.constant 0 : index
    %c0_6 = arith.constant 0 : index
    %6 = vector.load %arg5[%c0_5, %c0_6] : memref<16x32xbf16, #tpu.memory_space<vmem>>, vector<16x32xbf16>
    %7 = arith.extf %6 : vector<16x32xbf16> to vector<16x32xf32>
    %8 = arith.addf %5, %7 : vector<16x32xf32>
    %9 = arith.truncf %8 : vector<16x32xf32> to vector<16x32xbf16>
    %c0_7 = arith.constant 0 : index
    %c0_8 = arith.constant 0 : index
    %10 = vector.load %arg6[%c0_7, %c0_8] : memref<16x32xbf16, #tpu.memory_space<vmem>>, vector<16x32xbf16>
    tpu.vector_store %arg6[%c0_7, %c0_8], %9 {strides = array<i32>} : memref<16x32xbf16, #tpu.memory_space<vmem>>, vector<16x32xbf16>,
    return
  }
  func.func @transform_0(%arg0: i32, %arg1: i32) -> (i32, i32) {
    %c0_i32 = arith.constant 0 : i32
    %c0_i32_0 = arith.constant 0 : i32
    return %arg0, %c0_i32 : i32, i32
  }
  func.func @transform_1(%arg0: i32, %arg1: i32) -> (i32, i32) {
    %c0_i32 = arith.constant 0 : i32
    %c0_i32_0 = arith.constant 0 : i32
    return %c0_i32, %arg1 : i32, i32
  }
  func.func @transform_2(%arg0: i32, %arg1: i32) -> (i32, i32) {
    %c0_i32 = arith.constant 0 : i32
    %c0_i32_0 = arith.constant 0 : i32
    return %c0_i32, %arg1 : i32, i32
  }
  func.func @transform_3(%arg0: i32, %arg1: i32) -> (i32, i32) {
    %c0_i32 = arith.constant 0 : i32
    return %arg0, %arg1 : i32, i32
  }
  func.func @transform_4(%arg0: i32, %arg1: i32) -> (i32, i32) {
    %c0_i32 = arith.constant 0 : i32
    return %arg0, %arg1 : i32, i32
  }
}

module attributes {stable_mosaic.version = 11 : i64} {
  func.func @_linear_kernel(%arg0: i32, %arg1: i32, %arg2: memref<16x32xbf16, #tpu.memory_space<vmem>>, %arg3: memref<32x128xbf16, #tpu.memory_space<vmem>>, %arg4: memref<1x128xf32, #tpu.memory_space<vmem>>, %arg5: memref<1x32xf32, #tpu.memory_space<vmem>>, %arg6: memref<1x32xf32, #tpu.memory_space<vmem>>, %arg7: memref<16x128xbf16, #tpu.memory_space<vmem>>) attributes {dimension_semantics = [#tpu.dimension_semantics<parallel>, #tpu.dimension_semantics<parallel>], iteration_bounds = array<i64: 1, 1>, scalar_prefetch = 0 : i64, scratch_operands = 0 : i64, tpu.core_type = #tpu.core_type<tc>, window_params = [{transform_indices = @transform_0, window_bounds = array<i64: 16, 32>}, {transform_indices = @transform_1, window_bounds = array<i64: 32, 128>}, {transform_indices = @transform_2, window_bounds = array<i64: 1, 128>}, {pipeline_mode = #tpu.pipeline_mode<synchronous>, transform_indices = @transform_3, window_bounds = array<i64: 1, 32>}, {pipeline_mode = #tpu.pipeline_mode<synchronous>, transform_indices = @transform_4, window_bounds = array<i64: 1, 32>}, {transform_indices = @transform_5, window_bounds = array<i64: 16, 128>}]} {
    %c0 = arith.constant 0 : index
    %c0_0 = arith.constant 0 : index
    %0 = vector.load %arg2[%c0, %c0_0] : memref<16x32xbf16, #tpu.memory_space<vmem>>, vector<16x32xbf16>
    %1 = arith.extf %0 : vector<16x32xbf16> to vector<16x32xf32>
    %cst = arith.constant dense<0.000000e+00> : vector<16xf32>
    %2 = vector.multi_reduction <add>, %1, %cst [1] : vector<16x32xf32> to vector<16xf32>
    %3 = vector.shape_cast %2 : vector<16xf32> to vector<16x1xf32>
    %cst_1 = arith.constant 3.200000e+01 : f32
    %4 = vector.broadcast %cst_1 : f32 to vector<16x1xf32>
    %5 = arith.divf %3, %4 : vector<16x1xf32>
    %6 = vector.broadcast %5 : vector<16x1xf32> to vector<16x32xf32>
    %7 = arith.subf %1, %6 : vector<16x32xf32>
    %8 = arith.mulf %7, %7 : vector<16x32xf32>
    %cst_2 = arith.constant dense<0.000000e+00> : vector<16xf32>
    %9 = vector.multi_reduction <add>, %8, %cst_2 [1] : vector<16x32xf32> to vector<16xf32>
    %10 = vector.shape_cast %9 : vector<16xf32> to vector<16x1xf32>
    %cst_3 = arith.constant 3.200000e+01 : f32
    %11 = vector.broadcast %cst_3 : f32 to vector<16x1xf32>
    %12 = arith.divf %10, %11 : vector<16x1xf32>
    %cst_4 = arith.constant 9.99999974E-6 : f32
    %13 = vector.broadcast %cst_4 : f32 to vector<16x1xf32>
    %14 = arith.addf %12, %13 : vector<16x1xf32>
    %15 = math.rsqrt %14 : vector<16x1xf32>
    %16 = vector.broadcast %15 : vector<16x1xf32> to vector<16x32xf32>
    %17 = arith.mulf %7, %16 : vector<16x32xf32>
    %c0_5 = arith.constant 0 : index
    %c0_6 = arith.constant 0 : index
    %18 = vector.load %arg5[%c0_5, %c0_6] : memref<1x32xf32, #tpu.memory_space<vmem>>, vector<1x32xf32>
    %19 = vector.broadcast %18 : vector<1x32xf32> to vector<16x32xf32>
    %20 = arith.mulf %17, %19 : vector<16x32xf32>
    %c0_7 = arith.constant 0 : index
    %c0_8 = arith.constant 0 : index
    %21 = vector.load %arg6[%c0_7, %c0_8] : memref<1x32xf32, #tpu.memory_space<vmem>>, vector<1x32xf32>
    %22 = vector.broadcast %21 : vector<1x32xf32> to vector<16x32xf32>
    %23 = arith.addf %20, %22 : vector<16x32xf32>
    %24 = arith.truncf %23 : vector<16x32xf32> to vector<16x32xbf16>
    %c0_9 = arith.constant 0 : index
    %c0_10 = arith.constant 0 : index
    %25 = vector.load %arg3[%c0_9, %c0_10] : memref<32x128xbf16, #tpu.memory_space<vmem>>, vector<32x128xbf16>
    %cst_11 = arith.constant dense<0.000000e+00> : vector<16x128xf32>
    %26 = tpu.matmul %24, %25, %cst_11 {dimension_numbers = #tpu.dot_dimension_numbers<[1], [0], [0], [1], [0, 0, 1, 1], [], []>} : vector<16x32xbf16>, vector<32x128xbf16>, vector<16x128xf32> -> vector<16x128xf32>
    %c0_12 = arith.constant 0 : index
    %c0_13 = arith.constant 0 : index
    %27 = vector.load %arg4[%c0_12, %c0_13] : memref<1x128xf32, #tpu.memory_space<vmem>>, vector<1x128xf32>
    %28 = vector.broadcast %27 : vector<1x128xf32> to vector<16x128xf32>
    %29 = arith.addf %26, %28 : vector<16x128xf32>
    %cst_14 = arith.constant 5.000000e-01 : f32
    %30 = vector.broadcast %cst_14 : f32 to vector<16x128xf32>
    %31 = arith.mulf %30, %29 : vector<16x128xf32>
    %cst_15 = arith.constant 4.471500e-02 : f32
    %32 = vector.broadcast %cst_15 : f32 to vector<16x128xf32>
    %33 = arith.mulf %32, %29 : vector<16x128xf32>
    %34 = arith.mulf %33, %29 : vector<16x128xf32>
    %35 = arith.mulf %34, %29 : vector<16x128xf32>
    %36 = arith.addf %29, %35 : vector<16x128xf32>
    %cst_16 = arith.constant 0.797884583 : f32
    %37 = vector.broadcast %cst_16 : f32 to vector<16x128xf32>
    %38 = arith.mulf %37, %36 : vector<16x128xf32>
    %39 = math.tanh %38 : vector<16x128xf32>
    %cst_17 = arith.constant 1.000000e+00 : f32
    %40 = vector.broadcast %cst_17 : f32 to vector<16x128xf32>
    %41 = arith.addf %40, %39 : vector<16x128xf32>
    %42 = arith.mulf %31, %41 : vector<16x128xf32>
    %43 = arith.truncf %42 : vector<16x128xf32> to vector<16x128xbf16>
    %c0_18 = arith.constant 0 : index
    %c0_19 = arith.constant 0 : index
    %44 = vector.load %arg7[%c0_18, %c0_19] : memref<16x128xbf16, #tpu.memory_space<vmem>>, vector<16x128xbf16>
    tpu.vector_store %arg7[%c0_18, %c0_19], %43 {strides = array<i32>} : memref<16x128xbf16, #tpu.memory_space<vmem>>, vector<16x128xbf16>,
    return
  }
  func.func @transform_0(%arg0: i32, %arg1: i32) -> (i32, i32) {
    %c0_i32 = arith.constant 0 : i32
    %c0_i32_0 = arith.constant 0 : i32
    return %arg0, %c0_i32 : i32, i32
  }
  func.func @transform_1(%arg0: i32, %arg1: i32) -> (i32, i32) {
    %c0_i32 = arith.constant 0 : i32
    %c0_i32_0 = arith.constant 0 : i32
    return %c0_i32, %arg1 : i32, i32
  }
  func.func @transform_2(%arg0: i32, %arg1: i32) -> (i32, i32) {
    %c0_i32 = arith.constant 0 : i32
    %c0_i32_0 = arith.constant 0 : i32
    return %c0_i32, %arg1 : i32, i32
  }
  func.func @transform_3(%arg0: i32, %arg1: i32) -> (i32, i32) {
    %c0_i32 = arith.constant 0 : i32
    %c0_i32_0 = arith.constant 0 : i32
    %c0_i32_1 = arith.constant 0 : i32
    return %c0_i32, %c0_i32_0 : i32, i32
  }
  func.func @transform_4(%arg0: i32, %arg1: i32) -> (i32, i32) {
    %c0_i32 = arith.constant 0 : i32
    %c0_i32_0 = arith.constant 0 : i32
    %c0_i32_1 = arith.constant 0 : i32
    return %c0_i32, %c0_i32_0 : i32, i32
  }
  func.func @transform_5(%arg0: i32, %arg1: i32) -> (i32, i32) {
    %c0_i32 = arith.constant 0 : i32
    return %arg0, %arg1 : i32, i32
  }
}

module attributes {stable_mosaic.version = 11 : i64} {
  func.func @_flash_attn_kernel(%arg0: i32, %arg1: i32, %arg2: i32, %arg3: i32, %arg4: memref<1x1x2x8x16xbf16, #tpu.memory_space<vmem>>, %arg5: memref<1x1x2x8x16xbf16, #tpu.memory_space<vmem>>, %arg6: memref<1x1x2x8x16xbf16, #tpu.memory_space<vmem>>, %arg7: memref<1x1x8xf32, #tpu.memory_space<vmem>>, %arg8: memref<1x8x32xbf16, #tpu.memory_space<vmem>>, %arg9: memref<2x8x1xf32, #tpu.memory_space<vmem>>, %arg10: memref<2x8x1xf32, #tpu.memory_space<vmem>>, %arg11: memref<2x8x16xf32, #tpu.memory_space<vmem>>) attributes {dimension_semantics = [#tpu.dimension_semantics<parallel>, #tpu.dimension_semantics<parallel>, #tpu.dimension_semantics<parallel>, #tpu.dimension_semantics<arbitrary>], iteration_bounds = array<i64: 2, 1, 1, 1>, scalar_prefetch = 0 : i64, scratch_operands = 3 : i64, tpu.core_type = #tpu.core_type<tc>, window_params = [{transform_indices = @transform_0, window_bounds = array<i64: 1, 1, 2, 8, 16>}, {transform_indices = @transform_1, window_bounds = array<i64: 1, 1, 2, 8, 16>}, {transform_indices = @transform_2, window_bounds = array<i64: 1, 1, 2, 8, 16>}, {transform_indices = @transform_3, window_bounds = array<i64: 1, 1, 8>}, {transform_indices = @transform_4, window_bounds = array<i64: 1, 8, 32>}]} {
    %c0_i32 = arith.constant 0 : i32
    %0 = arith.cmpi eq, %arg3, %c0_i32 : i32
    %1 = arith.extui %0 : i1 to i32
    %c0_i32_0 = arith.constant 0 : i32
    %2 = arith.cmpi ne, %1, %c0_i32_0 : i32
    scf.if %2 {
      %cst_82 = arith.constant -1.000000e+30 : f32
      %107 = vector.broadcast %cst_82 : f32 to vector<2x8x1xf32>
      %c0_83 = arith.constant 0 : index
      %c0_84 = arith.constant 0 : index
      %c0_85 = arith.constant 0 : index
      %108 = vector.load %arg9[%c0_83, %c0_84, %c0_85] : memref<2x8x1xf32, #tpu.memory_space<vmem>>, vector<2x8x1xf32>
      tpu.vector_store %arg9[%c0_83, %c0_84, %c0_85], %107 {strides = array<i32>} : memref<2x8x1xf32, #tpu.memory_space<vmem>>, vector<2x8x1xf32>,
      %cst_86 = arith.constant 0.000000e+00 : f32
      %109 = vector.broadcast %cst_86 : f32 to vector<2x8x1xf32>
      %c0_87 = arith.constant 0 : index
      %c0_88 = arith.constant 0 : index
      %c0_89 = arith.constant 0 : index
      %110 = vector.load %arg10[%c0_87, %c0_88, %c0_89] : memref<2x8x1xf32, #tpu.memory_space<vmem>>, vector<2x8x1xf32>
      tpu.vector_store %arg10[%c0_87, %c0_88, %c0_89], %109 {strides = array<i32>} : memref<2x8x1xf32, #tpu.memory_space<vmem>>, vector<2x8x1xf32>,
      %cst_90 = arith.constant 0.000000e+00 : f32
      %111 = vector.broadcast %cst_90 : f32 to vector<2x8x16xf32>
      %c0_91 = arith.constant 0 : index
      %c0_92 = arith.constant 0 : index
      %c0_93 = arith.constant 0 : index
      %112 = vector.load %arg11[%c0_91, %c0_92, %c0_93] : memref<2x8x16xf32, #tpu.memory_space<vmem>>, vector<2x8x16xf32>
      tpu.vector_store %arg11[%c0_91, %c0_92, %c0_93], %111 {strides = array<i32>} : memref<2x8x16xf32, #tpu.memory_space<vmem>>, vector<2x8x16xf32>,
    } else {
    }
    %3 = tpu.iota {dimensions = array<i32: 0>} : vector<8x8xi32>
    %c8_i32 = arith.constant 8 : i32
    %4 = arith.muli %arg2, %c8_i32 : i32
    %5 = vector.broadcast %4 : i32 to vector<8x8xi32>
    %6 = arith.addi %3, %5 : vector<8x8xi32>
    %7 = tpu.iota {dimensions = array<i32: 1>} : vector<8x8xi32>
    %c8_i32_1 = arith.constant 8 : i32
    %8 = arith.muli %arg3, %c8_i32_1 : i32
    %9 = vector.broadcast %8 : i32 to vector<8x8xi32>
    %10 = arith.addi %7, %9 : vector<8x8xi32>
    %11 = arith.cmpi sle, %10, %6 : vector<8x8xi32>
    %c0 = arith.constant 0 : index
    %c0_2 = arith.constant 0 : index
    %c0_3 = arith.constant 0 : index
    %12 = vector.load %arg7[%c0, %c0_2, %c0_3] : memref<1x1x8xf32, #tpu.memory_space<vmem>>, vector<1x1x8xf32>
    %13 = vector.shape_cast %12 : vector<1x1x8xf32> to vector<1x8xf32>
    %c0_4 = arith.constant 0 : index
    %c0_5 = arith.constant 0 : index
    %c0_6 = arith.constant 0 : index
    %c0_7 = arith.constant 0 : index
    %c0_8 = arith.constant 0 : index
    %14 = vector.load %arg4[%c0_4, %c0_5, %c0_6, %c0_7, %c0_8] : memref<1x1x2x8x16xbf16, #tpu.memory_space<vmem>>, vector<1x1x1x8x16xbf16>
    %15 = vector.shape_cast %14 : vector<1x1x1x8x16xbf16> to vector<8x16xbf16>
    %c0_9 = arith.constant 0 : index
    %c0_10 = arith.constant 0 : index
    %c0_11 = arith.constant 0 : index
    %c0_12 = arith.constant 0 : index
    %c0_13 = arith.constant 0 : index
    %16 = vector.load %arg5[%c0_9, %c0_10, %c0_11, %c0_12, %c0_13] : memref<1x1x2x8x16xbf16, #tpu.memory_space<vmem>>, vector<1x1x1x8x16xbf16>
    %17 = vector.shape_cast %16 : vector<1x1x1x8x16xbf16> to vector<8x16xbf16>
    %c0_14 = arith.constant 0 : index
    %c0_15 = arith.constant 0 : index
    %c0_16 = arith.constant 0 : index
    %c0_17 = arith.constant 0 : index
    %c0_18 = arith.constant 0 : index
    %18 = vector.load %arg6[%c0_14, %c0_15, %c0_16, %c0_17, %c0_18] : memref<1x1x2x8x16xbf16, #tpu.memory_space<vmem>>, vector<1x1x1x8x16xbf16>
    %19 = vector.shape_cast %18 : vector<1x1x1x8x16xbf16> to vector<8x16xbf16>
    %cst = arith.constant dense<0.000000e+00> : vector<8x8xf32>
    %20 = tpu.matmul %15, %17, %cst {dimension_numbers = #tpu.dot_dimension_numbers<[1], [1], [0], [0], [0, 0, 1, 0], [], []>} : vector<8x16xbf16>, vector<8x16xbf16>, vector<8x8xf32> -> vector<8x8xf32>
    %cst_19 = arith.constant 2.500000e-01 : f32
    %21 = vector.broadcast %cst_19 : f32 to vector<8x8xf32>
    %22 = arith.mulf %20, %21 : vector<8x8xf32>
    %cst_20 = arith.constant -1.000000e+09 : f32
    %23 = vector.broadcast %cst_20 : f32 to vector<8x8xf32>
    %24 = arith.select %11, %22, %23 : vector<8x8xi1>, vector<8x8xf32>
    %25 = vector.broadcast %13 : vector<1x8xf32> to vector<8x8xf32>
    %26 = arith.addf %24, %25 : vector<8x8xf32>
    %c0_21 = arith.constant 0 : index
    %c0_22 = arith.constant 0 : index
    %c0_23 = arith.constant 0 : index
    %27 = vector.load %arg9[%c0_21, %c0_22, %c0_23] : memref<2x8x1xf32, #tpu.memory_space<vmem>>, vector<1x8x1xf32>
    %28 = vector.shape_cast %27 : vector<1x8x1xf32> to vector<8x1xf32>
    %cst_24 = arith.constant dense<0xFF800000> : vector<8xf32>
    %29 = vector.multi_reduction <maximumf>, %26, %cst_24 [1] : vector<8x8xf32> to vector<8xf32>
    %30 = vector.shape_cast %29 : vector<8xf32> to vector<8x1xf32>
    %31 = arith.maximumf %28, %30 : vector<8x1xf32>
    %32 = arith.subf %28, %31 : vector<8x1xf32>
    %33 = math.exp %32 : vector<8x1xf32>
    %34 = vector.broadcast %31 : vector<8x1xf32> to vector<8x8xf32>
    %35 = arith.subf %26, %34 : vector<8x8xf32>
    %36 = math.exp %35 : vector<8x8xf32>
    %c0_25 = arith.constant 0 : index
    %c0_26 = arith.constant 0 : index
    %c0_27 = arith.constant 0 : index
    %37 = vector.load %arg10[%c0_25, %c0_26, %c0_27] : memref<2x8x1xf32, #tpu.memory_space<vmem>>, vector<1x8x1xf32>
    %38 = vector.shape_cast %37 : vector<1x8x1xf32> to vector<8x1xf32>
    %39 = arith.mulf %33, %38 : vector<8x1xf32>
    %cst_28 = arith.constant dense<0.000000e+00> : vector<8xf32>
    %40 = vector.multi_reduction <add>, %36, %cst_28 [1] : vector<8x8xf32> to vector<8xf32>
    %41 = vector.shape_cast %40 : vector<8xf32> to vector<8x1xf32>
    %42 = arith.addf %39, %41 : vector<8x1xf32>
    %c0_29 = arith.constant 0 : index
    %c0_30 = arith.constant 0 : index
    %c0_31 = arith.constant 0 : index
    %43 = vector.load %arg10[%c0_29, %c0_30, %c0_31] : memref<2x8x1xf32, #tpu.memory_space<vmem>>, vector<1x8x1xf32>
    %44 = vector.shape_cast %43 : vector<1x8x1xf32> to vector<8x1xf32>
    %45 = vector.shape_cast %42 : vector<8x1xf32> to vector<1x8x1xf32>
    tpu.vector_store %arg10[%c0_29, %c0_30, %c0_31], %45 {strides = array<i32>} : memref<2x8x1xf32, #tpu.memory_space<vmem>>, vector<1x8x1xf32>,
    %c0_32 = arith.constant 0 : index
    %c0_33 = arith.constant 0 : index
    %c0_34 = arith.constant 0 : index
    %46 = vector.load %arg11[%c0_32, %c0_33, %c0_34] : memref<2x8x16xf32, #tpu.memory_space<vmem>>, vector<1x8x16xf32>
    %47 = vector.shape_cast %46 : vector<1x8x16xf32> to vector<8x16xf32>
    %48 = vector.broadcast %33 : vector<8x1xf32> to vector<8x16xf32>
    %49 = arith.mulf %48, %47 : vector<8x16xf32>
    %50 = arith.truncf %36 : vector<8x8xf32> to vector<8x8xbf16>
    %cst_35 = arith.constant dense<0.000000e+00> : vector<8x16xf32>
    %51 = tpu.matmul %50, %19, %cst_35 {dimension_numbers = #tpu.dot_dimension_numbers<[1], [0], [0], [1], [0, 0, 1, 1], [], []>} : vector<8x8xbf16>, vector<8x16xbf16>, vector<8x16xf32> -> vector<8x16xf32>
    %52 = arith.addf %49, %51 : vector<8x16xf32>
    %c0_36 = arith.constant 0 : index
    %c0_37 = arith.constant 0 : index
    %c0_38 = arith.constant 0 : index
    %53 = vector.load %arg11[%c0_36, %c0_37, %c0_38] : memref<2x8x16xf32, #tpu.memory_space<vmem>>, vector<1x8x16xf32>
    %54 = vector.shape_cast %53 : vector<1x8x16xf32> to vector<8x16xf32>
    %55 = vector.shape_cast %52 : vector<8x16xf32> to vector<1x8x16xf32>
    tpu.vector_store %arg11[%c0_36, %c0_37, %c0_38], %55 {strides = array<i32>} : memref<2x8x16xf32, #tpu.memory_space<vmem>>, vector<1x8x16xf32>,
    %c0_39 = arith.constant 0 : index
    %c0_40 = arith.constant 0 : index
    %c0_41 = arith.constant 0 : index
    %56 = vector.load %arg9[%c0_39, %c0_40, %c0_41] : memref<2x8x1xf32, #tpu.memory_space<vmem>>, vector<1x8x1xf32>
    %57 = vector.shape_cast %56 : vector<1x8x1xf32> to vector<8x1xf32>
    %58 = vector.shape_cast %31 : vector<8x1xf32> to vector<1x8x1xf32>
    tpu.vector_store %arg9[%c0_39, %c0_40, %c0_41], %58 {strides = array<i32>} : memref<2x8x1xf32, #tpu.memory_space<vmem>>, vector<1x8x1xf32>,
    %c0_42 = arith.constant 0 : index
    %c0_43 = arith.constant 0 : index
    %c1 = arith.constant 1 : index
    %c0_44 = arith.constant 0 : index
    %c0_45 = arith.constant 0 : index
    %59 = vector.load %arg4[%c0_42, %c0_43, %c1, %c0_44, %c0_45] : memref<1x1x2x8x16xbf16, #tpu.memory_space<vmem>>, vector<1x1x1x8x16xbf16>
    %60 = vector.shape_cast %59 : vector<1x1x1x8x16xbf16> to vector<8x16xbf16>
    %c0_46 = arith.constant 0 : index
    %c0_47 = arith.constant 0 : index
    %c1_48 = arith.constant 1 : index
    %c0_49 = arith.constant 0 : index
    %c0_50 = arith.constant 0 : index
    %61 = vector.load %arg5[%c0_46, %c0_47, %c1_48, %c0_49, %c0_50] : memref<1x1x2x8x16xbf16, #tpu.memory_space<vmem>>, vector<1x1x1x8x16xbf16>
    %62 = vector.shape_cast %61 : vector<1x1x1x8x16xbf16> to vector<8x16xbf16>
    %c0_51 = arith.constant 0 : index
    %c0_52 = arith.constant 0 : index
    %c1_53 = arith.constant 1 : index
    %c0_54 = arith.constant 0 : index
    %c0_55 = arith.constant 0 : index
    %63 = vector.load %arg6[%c0_51, %c0_52, %c1_53, %c0_54, %c0_55] : memref<1x1x2x8x16xbf16, #tpu.memory_space<vmem>>, vector<1x1x1x8x16xbf16>
    %64 = vector.shape_cast %63 : vector<1x1x1x8x16xbf16> to vector<8x16xbf16>
    %cst_56 = arith.constant dense<0.000000e+00> : vector<8x8xf32>
    %65 = tpu.matmul %60, %62, %cst_56 {dimension_numbers = #tpu.dot_dimension_numbers<[1], [1], [0], [0], [0, 0, 1, 0], [], []>} : vector<8x16xbf16>, vector<8x16xbf16>, vector<8x8xf32> -> vector<8x8xf32>
    %cst_57 = arith.constant 2.500000e-01 : f32
    %66 = vector.broadcast %cst_57 : f32 to vector<8x8xf32>
    %67 = arith.mulf %65, %66 : vector<8x8xf32>
    %cst_58 = arith.constant -1.000000e+09 : f32
    %68 = vector.broadcast %cst_58 : f32 to vector<8x8xf32>
    %69 = arith.select %11, %67, %68 : vector<8x8xi1>, vector<8x8xf32>
    %70 = vector.broadcast %13 : vector<1x8xf32> to vector<8x8xf32>
    %71 = arith.addf %69, %70 : vector<8x8xf32>
    %c1_59 = arith.constant 1 : index
    %c0_60 = arith.constant 0 : index
    %c0_61 = arith.constant 0 : index
    %72 = vector.load %arg9[%c1_59, %c0_60, %c0_61] : memref<2x8x1xf32, #tpu.memory_space<vmem>>, vector<1x8x1xf32>
    %73 = vector.shape_cast %72 : vector<1x8x1xf32> to vector<8x1xf32>
    %cst_62 = arith.constant dense<0xFF800000> : vector<8xf32>
    %74 = vector.multi_reduction <maximumf>, %71, %cst_62 [1] : vector<8x8xf32> to vector<8xf32>
    %75 = vector.shape_cast %74 : vector<8xf32> to vector<8x1xf32>
    %76 = arith.maximumf %73, %75 : vector<8x1xf32>
    %77 = arith.subf %73, %76 : vector<8x1xf32>
    %78 = math.exp %77 : vector<8x1xf32>
    %79 = vector.broadcast %76 : vector<8x1xf32> to vector<8x8xf32>
    %80 = arith.subf %71, %79 : vector<8x8xf32>
    %81 = math.exp %80 : vector<8x8xf32>
    %c1_63 = arith.constant 1 : index
    %c0_64 = arith.constant 0 : index
    %c0_65 = arith.constant 0 : index
    %82 = vector.load %arg10[%c1_63, %c0_64, %c0_65] : memref<2x8x1xf32, #tpu.memory_space<vmem>>, vector<1x8x1xf32>
    %83 = vector.shape_cast %82 : vector<1x8x1xf32> to vector<8x1xf32>
    %84 = arith.mulf %78, %83 : vector<8x1xf32>
    %cst_66 = arith.constant dense<0.000000e+00> : vector<8xf32>
    %85 = vector.multi_reduction <add>, %81, %cst_66 [1] : vector<8x8xf32> to vector<8xf32>
    %86 = vector.shape_cast %85 : vector<8xf32> to vector<8x1xf32>
    %87 = arith.addf %84, %86 : vector<8x1xf32>
    %c1_67 = arith.constant 1 : index
    %c0_68 = arith.constant 0 : index
    %c0_69 = arith.constant 0 : index
    %88 = vector.load %arg10[%c1_67, %c0_68, %c0_69] : memref<2x8x1xf32, #tpu.memory_space<vmem>>, vector<1x8x1xf32>
    %89 = vector.shape_cast %88 : vector<1x8x1xf32> to vector<8x1xf32>
    %90 = vector.shape_cast %87 : vector<8x1xf32> to vector<1x8x1xf32>
    tpu.vector_store %arg10[%c1_67, %c0_68, %c0_69], %90 {strides = array<i32>} : memref<2x8x1xf32, #tpu.memory_space<vmem>>, vector<1x8x1xf32>,
    %c1_70 = arith.constant 1 : index
    %c0_71 = arith.constant 0 : index
    %c0_72 = arith.constant 0 : index
    %91 = vector.load %arg11[%c1_70, %c0_71, %c0_72] : memref<2x8x16xf32, #tpu.memory_space<vmem>>, vector<1x8x16xf32>
    %92 = vector.shape_cast %91 : vector<1x8x16xf32> to vector<8x16xf32>
    %93 = vector.broadcast %78 : vector<8x1xf32> to vector<8x16xf32>
    %94 = arith.mulf %93, %92 : vector<8x16xf32>
    %95 = arith.truncf %81 : vector<8x8xf32> to vector<8x8xbf16>
    %cst_73 = arith.constant dense<0.000000e+00> : vector<8x16xf32>
    %96 = tpu.matmul %95, %64, %cst_73 {dimension_numbers = #tpu.dot_dimension_numbers<[1], [0], [0], [1], [0, 0, 1, 1], [], []>} : vector<8x8xbf16>, vector<8x16xbf16>, vector<8x16xf32> -> vector<8x16xf32>
    %97 = arith.addf %94, %96 : vector<8x16xf32>
    %c1_74 = arith.constant 1 : index
    %c0_75 = arith.constant 0 : index
    %c0_76 = arith.constant 0 : index
    %98 = vector.load %arg11[%c1_74, %c0_75, %c0_76] : memref<2x8x16xf32, #tpu.memory_space<vmem>>, vector<1x8x16xf32>
    %99 = vector.shape_cast %98 : vector<1x8x16xf32> to vector<8x16xf32>
    %100 = vector.shape_cast %97 : vector<8x16xf32> to vector<1x8x16xf32>
    tpu.vector_store %arg11[%c1_74, %c0_75, %c0_76], %100 {strides = array<i32>} : memref<2x8x16xf32, #tpu.memory_space<vmem>>, vector<1x8x16xf32>,
    %c1_77 = arith.constant 1 : index
    %c0_78 = arith.constant 0 : index
    %c0_79 = arith.constant 0 : index
    %101 = vector.load %arg9[%c1_77, %c0_78, %c0_79] : memref<2x8x1xf32, #tpu.memory_space<vmem>>, vector<1x8x1xf32>
    %102 = vector.shape_cast %101 : vector<1x8x1xf32> to vector<8x1xf32>
    %103 = vector.shape_cast %76 : vector<8x1xf32> to vector<1x8x1xf32>
    tpu.vector_store %arg9[%c1_77, %c0_78, %c0_79], %103 {strides = array<i32>} : memref<2x8x1xf32, #tpu.memory_space<vmem>>, vector<1x8x1xf32>,
    %c0_i32_80 = arith.constant 0 : i32
    %104 = arith.cmpi eq, %arg3, %c0_i32_80 : i32
    %105 = arith.extui %104 : i1 to i32
    %c0_i32_81 = arith.constant 0 : i32
    %106 = arith.cmpi ne, %105, %c0_i32_81 : i32
    scf.if %106 {
      %c0_82 = arith.constant 0 : index
      %c0_83 = arith.constant 0 : index
      %c0_84 = arith.constant 0 : index
      %107 = vector.load %arg11[%c0_82, %c0_83, %c0_84] : memref<2x8x16xf32, #tpu.memory_space<vmem>>, vector<1x8x16xf32>
      %108 = vector.shape_cast %107 : vector<1x8x16xf32> to vector<8x16xf32>
      %c0_85 = arith.constant 0 : index
      %c0_86 = arith.constant 0 : index
      %c0_87 = arith.constant 0 : index
      %109 = vector.load %arg10[%c0_85, %c0_86, %c0_87] : memref<2x8x1xf32, #tpu.memory_space<vmem>>, vector<1x8x1xf32>
      %110 = vector.shape_cast %109 : vector<1x8x1xf32> to vector<8x1xf32>
      %111 = tpu.reciprocal %110 : vector<8x1xf32> -> vector<8x1xf32>
      %112 = vector.broadcast %111 : vector<8x1xf32> to vector<8x16xf32>
      %113 = arith.mulf %108, %112 : vector<8x16xf32>
      %c1_88 = arith.constant 1 : index
      %c0_89 = arith.constant 0 : index
      %c0_90 = arith.constant 0 : index
      %114 = vector.load %arg11[%c1_88, %c0_89, %c0_90] : memref<2x8x16xf32, #tpu.memory_space<vmem>>, vector<1x8x16xf32>
      %115 = vector.shape_cast %114 : vector<1x8x16xf32> to vector<8x16xf32>
      %c1_91 = arith.constant 1 : index
      %c0_92 = arith.constant 0 : index
      %c0_93 = arith.constant 0 : index
      %116 = vector.load %arg10[%c1_91, %c0_92, %c0_93] : memref<2x8x1xf32, #tpu.memory_space<vmem>>, vector<1x8x1xf32>
      %117 = vector.shape_cast %116 : vector<1x8x1xf32> to vector<8x1xf32>
      %118 = tpu.reciprocal %117 : vector<8x1xf32> -> vector<8x1xf32>
      %119 = vector.broadcast %118 : vector<8x1xf32> to vector<8x16xf32>
      %120 = arith.mulf %115, %119 : vector<8x16xf32>
      %121 = tpu.concatenate %113, %120 in 1 : vector<8x16xf32>, vector<8x16xf32> -> vector<8x32xf32>
      %122 = arith.truncf %121 : vector<8x32xf32> to vector<8x32xbf16>
      %c0_94 = arith.constant 0 : index
      %c0_95 = arith.constant 0 : index
      %c0_96 = arith.constant 0 : index
      %123 = vector.load %arg8[%c0_94, %c0_95, %c0_96] : memref<1x8x32xbf16, #tpu.memory_space<vmem>>, vector<1x8x32xbf16>
      %124 = vector.shape_cast %123 : vector<1x8x32xbf16> to vector<8x32xbf16>
      %125 = vector.shape_cast %122 : vector<8x32xbf16> to vector<1x8x32xbf16>
      tpu.vector_store %arg8[%c0_94, %c0_95, %c0_96], %125 {strides = array<i32>} : memref<1x8x32xbf16, #tpu.memory_space<vmem>>, vector<1x8x32xbf16>,
    } else {
    }
    return
  }
  func.func @transform_0(%arg0: i32, %arg1: i32, %arg2: i32, %arg3: i32) -> (i32, i32, i32, i32, i32) {
    %c0_i32 = arith.constant 0 : i32
    %c0_i32_0 = arith.constant 0 : i32
    %c0_i32_1 = arith.constant 0 : i32
    return %c0_i32, %arg0, %arg1, %arg2, %c0_i32_0 : i32, i32, i32, i32, i32
  }
  func.func @transform_1(%arg0: i32, %arg1: i32, %arg2: i32, %arg3: i32) -> (i32, i32, i32, i32, i32) {
    %c1_i32 = arith.constant 1 : i32
    %c0_i32 = arith.constant 0 : i32
    %c0_i32_0 = arith.constant 0 : i32
    return %c1_i32, %arg0, %arg1, %arg3, %c0_i32 : i32, i32, i32, i32, i32
  }
  func.func @transform_2(%arg0: i32, %arg1: i32, %arg2: i32, %arg3: i32) -> (i32, i32, i32, i32, i32) {
    %c2_i32 = arith.constant 2 : i32
    %c0_i32 = arith.constant 0 : i32
    %c0_i32_0 = arith.constant 0 : i32
    return %c2_i32, %arg0, %arg1, %arg3, %c0_i32 : i32, i32, i32, i32, i32
  }
  func.func @transform_3(%arg0: i32, %arg1: i32, %arg2: i32, %arg3: i32) -> (i32, i32, i32) {
    %c0_i32 = arith.constant 0 : i32
    %c0_i32_0 = arith.constant 0 : i32
    return %arg0, %c0_i32, %arg3 : i32, i32, i32
  }
  func.func @transform_4(%arg0: i32, %arg1: i32, %arg2: i32, %arg3: i32) -> (i32, i32, i32) {
    %c0_i32 = arith.constant 0 : i32
    return %arg0, %arg2, %arg1 : i32, i32, i32
  }
}

module attributes {stable_mosaic.version = 11 : i64} {
  func.func @_linear_kernel(%arg0: i32, %arg1: i32, %arg2: memref<16x128xbf16, #tpu.memory_space<vmem>>, %arg3: memref<128x32xbf16, #tpu.memory_space<vmem>>, %arg4: memref<1x32xf32, #tpu.memory_space<vmem>>, %arg5: memref<16x32xbf16, #tpu.memory_space<vmem>>, %arg6: memref<16x32xbf16, #tpu.memory_space<vmem>>) attributes {dimension_semantics = [#tpu.dimension_semantics<parallel>, #tpu.dimension_semantics<parallel>], iteration_bounds = array<i64: 1, 1>, scalar_prefetch = 0 : i64, scratch_operands = 0 : i64, tpu.core_type = #tpu.core_type<tc>, window_params = [{transform_indices = @transform_0, window_bounds = array<i64: 16, 128>}, {transform_indices = @transform_1, window_bounds = array<i64: 128, 32>}, {transform_indices = @transform_2, window_bounds = array<i64: 1, 32>}, {transform_indices = @transform_3, window_bounds = array<i64: 16, 32>}, {transform_indices = @transform_4, window_bounds = array<i64: 16, 32>}]} {
    %c0 = arith.constant 0 : index
    %c0_0 = arith.constant 0 : index
    %0 = vector.load %arg2[%c0, %c0_0] : memref<16x128xbf16, #tpu.memory_space<vmem>>, vector<16x128xbf16>
    %c0_1 = arith.constant 0 : index
    %c0_2 = arith.constant 0 : index
    %1 = vector.load %arg3[%c0_1, %c0_2] : memref<128x32xbf16, #tpu.memory_space<vmem>>, vector<128x32xbf16>
    %cst = arith.constant dense<0.000000e+00> : vector<16x32xf32>
    %2 = tpu.matmul %0, %1, %cst {dimension_numbers = #tpu.dot_dimension_numbers<[1], [0], [0], [1], [0, 0, 1, 1], [], []>} : vector<16x128xbf16>, vector<128x32xbf16>, vector<16x32xf32> -> vector<16x32xf32>
    %c0_3 = arith.constant 0 : index
    %c0_4 = arith.constant 0 : index
    %3 = vector.load %arg4[%c0_3, %c0_4] : memref<1x32xf32, #tpu.memory_space<vmem>>, vector<1x32xf32>
    %4 = vector.broadcast %3 : vector<1x32xf32> to vector<16x32xf32>
    %5 = arith.addf %2, %4 : vector<16x32xf32>
    %c0_5 = arith.constant 0 : index
    %c0_6 = arith.constant 0 : index
    %6 = vector.load %arg5[%c0_5, %c0_6] : memref<16x32xbf16, #tpu.memory_space<vmem>>, vector<16x32xbf16>
    %7 = arith.extf %6 : vector<16x32xbf16> to vector<16x32xf32>
    %8 = arith.addf %5, %7 : vector<16x32xf32>
    %9 = arith.truncf %8 : vector<16x32xf32> to vector<16x32xbf16>
    %c0_7 = arith.constant 0 : index
    %c0_8 = arith.constant 0 : index
    %10 = vector.load %arg6[%c0_7, %c0_8] : memref<16x32xbf16, #tpu.memory_space<vmem>>, vector<16x32xbf16>
    tpu.vector_store %arg6[%c0_7, %c0_8], %9 {strides = array<i32>} : memref<16x32xbf16, #tpu.memory_space<vmem>>, vector<16x32xbf16>,
    return
  }
  func.func @transform_0(%arg0: i32, %arg1: i32) -> (i32, i32) {
    %c0_i32 = arith.constant 0 : i32
    %c0_i32_0 = arith.constant 0 : i32
    return %arg0, %c0_i32 : i32, i32
  }
  func.func @transform_1(%arg0: i32, %arg1: i32) -> (i32, i32) {
    %c0_i32 = arith.constant 0 : i32
    %c0_i32_0 = arith.constant 0 : i32
    return %c0_i32, %arg1 : i32, i32
  }
  func.func @transform_2(%arg0: i32, %arg1: i32) -> (i32, i32) {
    %c0_i32 = arith.constant 0 : i32
    %c0_i32_0 = arith.constant 0 : i32
    return %c0_i32, %arg1 : i32, i32
  }
  func.func @transform_3(%arg0: i32, %arg1: i32) -> (i32, i32) {
    %c0_i32 = arith.constant 0 : i32
    return %arg0, %arg1 : i32, i32
  }
  func.func @transform_4(%arg0: i32, %arg1: i32) -> (i32, i32) {
    %c0_i32 = arith.constant 0 : i32
    return %arg0, %arg1 : i32, i32
  }
}

</mosaic_0001>

<llo_original>
// kernel: gpt2_probe_forward.12
$region0: #{gpt2_probe_forward.12}
  #allocation0 [shape = 'u32[]', space=smem, size = 0x4, offset = 0x4, fixed_abs, tag = 'smem constant byte address 0x4 - core index']
  #allocation1 [shape = 'u32[144,128]{1,0:T(1,128)}', space=vmem, size = 0x12000, scoped, tag = 'internal scratch']
  %s0 = inlined_call_operand.vmem [shape: bf16[16,32], index: 0, kind: input, shape index: {}]
  %s1 = inlined_call_operand.vmem [shape: bf16[32,32], index: 1, kind: input, shape index: {}]
  %s2 = inlined_call_operand.vmem [shape: f32[1,32], index: 2, kind: input, shape index: {}]
  %s3 = inlined_call_operand.vmem [shape: bf16[16,32], index: 3, kind: input, shape index: {}]
  %s4 = inlined_call_operand.vmem [shape: bf16[16,32], index: 4, kind: output, shape index: {}]
  %s5 = sld [smem:[#allocation0]]
  $region26: #{gpt2_probe_forward.12} parent=0
    _
  %s7 = ssub.s32 1, %s5
  %s8 = scalar_select 0, %s7, %s5
  // Predicated region
  $region2: #{gpt2_probe_forward.12} parent=0 // pred_check
    _
  $region3: #{gpt2_probe_forward.12} parent=0 // pred_check_branch
    %10 = sbr.rel (0) target = $region5
  $region4: #{gpt2_probe_forward.12} parent=0 // pred_region
    _
  $region5: #{gpt2_probe_forward.12} parent=0 // pred_fallthru
    _
  // Predicated region
  $region6: #{gpt2_probe_forward.12} parent=0 // pred_check
    _
  $region7: #{gpt2_probe_forward.12} parent=0 // pred_check_branch
    %12 = sbr.rel (0) target = $region9
  $region8: #{gpt2_probe_forward.12} parent=0 // pred_region
    _
  $region9: #{gpt2_probe_forward.12} parent=0 // pred_fallthru
    _
  // Predicated region
  $region10: #{gpt2_probe_forward.12} parent=0 // pred_check
    _
  $region11: #{gpt2_probe_forward.12} parent=0 // pred_check_branch
    %14 = sbr.rel (0) target = $region13
  $region12: #{gpt2_probe_forward.12} parent=0 // pred_region
    _
  $region13: #{gpt2_probe_forward.12} parent=0 // pred_fallthru
    _
  // Predicated region
  $region14: #{gpt2_probe_forward.12} parent=0 // pred_check
    _
  $region15: #{gpt2_probe_forward.12} parent=0 // pred_check_branch
    %16 = sbr.rel (0) target = $region17
  $region16: #{gpt2_probe_forward.12} parent=0 // pred_region
    _
  $region17: #{gpt2_probe_forward.12} parent=0 // pred_fallthru
    _
  %v18 = vld [vmem:[%s0] sm:$0xf]
  %v19 = vld [vmem:[%s0 + $0x4] sm:$0xf]
  %v20 = vld [vmem:[%s1] sm:$0xf]
  %v21 = vld [vmem:[%s1 + $0x4] sm:$0xf]
  %v22 = vld [vmem:[%s1 + $0x8] sm:$0xf]
  %v23 = vld [vmem:[%s1 + $0xc] sm:$0xf]
  %v24 = vld [vmem:[%s2] sm:$0x1]
  %v26 = vlaneseq
  %v27 = vshrl.u32 %v26, 7
  %v28 = vsub.s32 0, %v27
  %v29 = vrot.slane %v24, %v28
  %v33 = vunpack.c.l.b16 %v18
  %v34 = vunpack.c.l.b16 %v19
  %v35 = vpack.c.b16 %v34, %v33
  %v40 = vunpack.c.l.b16 %v20
  %v41 = vunpack.c.l.b16 %v21
  %v42 = vunpack.c.l.b16 %v22
  %v43 = vunpack.c.l.b16 %v23
  %v44 = vpack.c.b16 %v41, %v40
  %v45 = vpack.c.b16 %v43, %v42
  %vm48 = vcmask 261120
  %v50 = vsel %vm48, %v35, 0
  %52 = vmatprep.subr.bf16.mxu0 0
  %53 = vmatpush1.bf16.msra.mxu0 %v44
  %54 = vmatprep.subr.bf16.mxu0 0
  %55 = vmatpush1.bf16.msra.mxu0 %v45
  %56 = vmatprep.subr.bf16.mxu0 0
  %57 = vmatpush1.bf16.msra.mxu0 0
  %58 = vmatprep.subr.bf16.mxu0 0
  %59 = vmatpush1.bf16.msra.mxu0 0
  %60 = vmatprep.subr.bf16.mxu0 0
  %61 = vmatpush1.bf16.msra.mxu0 0
  %62 = vmatprep.subr.bf16.mxu0 0
  %63 = vmatpush1.bf16.msra.mxu0 0
  %64 = vmatprep.subr.bf16.mxu0 0
  %65 = vmatpush1.bf16.msra.mxu0 0
  %66 = vmatprep.subr.bf16.mxu0 0
  %67 = vmatpush1.bf16.msra.mxu0 0
  %68 = vmatprep.subr.bf16.mxu0 0
  %69 = vmatpush1.bf16.msra.mxu0 0
  %70 = vmatprep.subr.bf16.mxu0 0
  %71 = vmatpush1.bf16.msra.mxu0 0
  %72 = vmatprep.subr.bf16.mxu0 0
  %73 = vmatpush1.bf16.msra.mxu0 0
  %74 = vmatprep.subr.bf16.mxu0 0
  %75 = vmatpush1.bf16.msra.mxu0 0
  %76 = vmatprep.subr.bf16.mxu0 0
  %77 = vmatpush1.bf16.msra.mxu0 0
  %78 = vmatprep.subr.bf16.mxu0 0
  %79 = vmatpush1.bf16.msra.mxu0 0
  %80 = vmatprep.subr.bf16.mxu0 0
  %81 = vmatpush1.bf16.msra.mxu0 0
  %82 = vmatprep.subr.bf16.mxu0 0
  %83 = vmatpush1.bf16.msra.mxu0 0
  %84 = vmatprep.mubr.bf16.mxu0 0
  %85 = vmatmul.mubr.bf16.gmra.mrb[0].mxu0 %v50
  %v86 = vpop.f32.mrb[0].mxu0
  %v87 = vadd.f32 %v29, %v86
  %v88 = vpop.f32.mrb[0].mxu0
  %v89 = vpop.f32.mrb[0].mxu0
  %v90 = vadd.f32 %v29, %v89
  %v91 = vpop.f32.mrb[0].mxu0
  %92 = vdwg.mxu0
  %v93 = vld [vmem:[%s3] sm:$0xf]
  %v94 = vld [vmem:[%s3 + $0x4] sm:$0xf]
  %v95 = vunpack.c.l.bf16 %v93
  %v96 = vunpack.c.l.bf16 %v94
  %v97 = vadd.f32 %v87, %v95
  %v98 = vadd.f32 %v90, %v96
  %v99 = vpack.c.bf16 %v98, %v97
  %v101 = vunpack.c.l.b16 %v99
  %v102 = vunpack.c.h.b16 %v99
  %v103 = vpack.c.b16 %v101, %v101
  %v104 = vpack.c.b16 %v102, %v102
  %vm107 = vcmask 257024
  %108 = vst.msk [vmem:[%s4] sm:$0xf] %vm107, %v103
  %109 = vst.msk [vmem:[%s4 + $0x4] sm:$0xf] %vm107, %v104
  // Predicated region
  $region18: #{gpt2_probe_forward.12} parent=0 // pred_check
    _
  $region19: #{gpt2_probe_forward.12} parent=0 // pred_check_branch
    %111 = sbr.rel (0) target = $region21
  $region20: #{gpt2_probe_forward.12} parent=0 // pred_region
    _
  $region21: #{gpt2_probe_forward.12} parent=0 // pred_fallthru
    _
  // Predicated region
  $region22: #{gpt2_probe_forward.12} parent=0 // pred_check
    _
  $region23: #{gpt2_probe_forward.12} parent=0 // pred_check_branch
    %113 = sbr.rel (0) target = $region25
  $region24: #{gpt2_probe_forward.12} parent=0 // pred_region
    _
  $region25: #{gpt2_probe_forward.12} parent=0 // pred_fallthru
    _

// kernel: gpt2_probe_forward.10
$region0: #{gpt2_probe_forward.10}
  #allocation0 [shape = 'u32[]', space=smem, size = 0x4, offset = 0x4, fixed_abs, tag = 'smem constant byte address 0x4 - core index']
  #allocation1 [shape = 'u32[144,128]{1,0:T(1,128)}', space=vmem, size = 0x12000, scoped, tag = 'internal scratch']
  %s0 = inlined_call_operand.vmem [shape: bf16[16,32], index: 0, kind: input, shape index: {}]
  %s1 = inlined_call_operand.vmem [shape: bf16[32,96], index: 1, kind: input, shape index: {}]
  %s2 = inlined_call_operand.vmem [shape: f32[1,96], index: 2, kind: input, shape index: {}]
  %s3 = inlined_call_operand.vmem [shape: f32[1,32], index: 3, kind: input, shape index: {}]
  %s4 = inlined_call_operand.vmem [shape: f32[1,32], index: 4, kind: input, shape index: {}]
  %s5 = inlined_call_operand.vmem [shape: bf16[16,96], index: 5, kind: output, shape index: {}]
  %s6 = sld [smem:[#allocation0]]
  $region30: #{gpt2_probe_forward.10} parent=0
    _
  %s8 = ssub.s32 1, %s6
  %s9 = scalar_select 0, %s8, %s6
  // Predicated region
  $region2: #{gpt2_probe_forward.10} parent=0 // pred_check
    _
  $region3: #{gpt2_probe_forward.10} parent=0 // pred_check_branch
    %11 = sbr.rel (0) target = $region5
  $region4: #{gpt2_probe_forward.10} parent=0 // pred_region
    _
  $region5: #{gpt2_probe_forward.10} parent=0 // pred_fallthru
    _
  // Predicated region
  $region6: #{gpt2_probe_forward.10} parent=0 // pred_check
    _
  $region7: #{gpt2_probe_forward.10} parent=0 // pred_check_branch
    %13 = sbr.rel (0) target = $region9
  $region8: #{gpt2_probe_forward.10} parent=0 // pred_region
    _
  $region9: #{gpt2_probe_forward.10} parent=0 // pred_fallthru
    _
  // Predicated region
  $region10: #{gpt2_probe_forward.10} parent=0 // pred_check
    _
  $region11: #{gpt2_probe_forward.10} parent=0 // pred_check_branch
    %15 = sbr.rel (0) target = $region13
  $region12: #{gpt2_probe_forward.10} parent=0 // pred_region
    _
  $region13: #{gpt2_probe_forward.10} parent=0 // pred_fallthru
    _
  // Predicated region
  $region14: #{gpt2_probe_forward.10} parent=0 // pred_check
    _
  $region15: #{gpt2_probe_forward.10} parent=0 // pred_check_branch
    %17 = sbr.rel (0) target = $region17
  $region16: #{gpt2_probe_forward.10} parent=0 // pred_region
    _
  $region17: #{gpt2_probe_forward.10} parent=0 // pred_fallthru
    _
  // Predicated region
  $region18: #{gpt2_probe_forward.10} parent=0 // pred_check
    _
  $region19: #{gpt2_probe_forward.10} parent=0 // pred_check_branch
    %19 = sbr.rel (0) target = $region21
  $region20: #{gpt2_probe_forward.10} parent=0 // pred_region
    _
  $region21: #{gpt2_probe_forward.10} parent=0 // pred_fallthru
    _
  %v21 = vld [vmem:[%s0] sm:$0xf]
  %v22 = vld [vmem:[%s0 + $0x4] sm:$0xf]
  %v23 = vunpack.c.l.bf16 %v21
  %v24 = vunpack.c.l.bf16 %v22
  %vm25 = vcmask 261120
  %v26 = vsel %vm25, %v23, 0.0
  %27 = vadd.xlane.f32.xlu0 %v26
  %v28 = vpop.xlane.xlu0 %27
  %v29 = vsel %vm25, %v24, 0.0
  %30 = vadd.xlane.f32.xlu0 %v29
  %v31 = vpop.xlane.xlu0 %30
  %v32 = vrcp.pop 32.0
  %v33 = vmul.f32 %v28, %v32
  %v34 = vmul.f32 %v31, %v32
  %v35 = vsub.f32 %v23, %v33
  %v36 = vsub.f32 %v24, %v34
  %v37 = vmul.f32 %v35, %v35
  %v38 = vmul.f32 %v36, %v36
  %v39 = vsel %vm25, %v37, 0.0
  %40 = vadd.xlane.f32.xlu0 %v39
  %v41 = vpop.xlane.xlu0 %40
  %v42 = vsel %vm25, %v38, 0.0
  %43 = vadd.xlane.f32.xlu0 %v42
  %v44 = vpop.xlane.xlu0 %43
  %v45 = vmul.f32 %v41, %v32
  %v46 = vmul.f32 %v44, %v32
  %v47 = vadd.f32 %v45, 1e-05
  %v48 = vadd.f32 %v46, 1e-05
  %v49 = vrsqrt.pop %v47
  %v50 = vrsqrt.pop %v48
  %v51 = vmul.f32 %v35, %v49
  %v52 = vmul.f32 %v36, %v50
  %v53 = vld [vmem:[%s3] sm:$0x1]
  %v55 = vlaneseq
  %v56 = vshrl.u32 %v55, 7
  %v57 = vsub.s32 0, %v56
  %v58 = vrot.slane %v53, %v57
  %v60 = vmul.f32 %v51, %v58
  %v61 = vmul.f32 %v52, %v58
  %v62 = vld [vmem:[%s4] sm:$0x1]
  %v64 = vlaneseq
  %v65 = vshrl.u32 %v64, 7
  %v66 = vsub.s32 0, %v65
  %v67 = vrot.slane %v62, %v66
  %v69 = vadd.f32 %v60, %v67
  %v70 = vadd.f32 %v61, %v67
  %v71 = vpack.c.bf16 %v70, %v69
  %v72 = vld [vmem:[%s1] sm:$0xf]
  %v73 = vld [vmem:[%s1 + $0x4] sm:$0xf]
  %v74 = vld [vmem:[%s1 + $0x8] sm:$0xf]
  %v75 = vld [vmem:[%s1 + $0xc] sm:$0xf]
  %v76 = vld [vmem:[%s2] sm:$0x1]
  %v78 = vlaneseq
  %v79 = vshrl.u32 %v78, 7
  %v80 = vsub.s32 0, %v79
  %v81 = vrot.slane %v76, %v80
  %v87 = vunpack.c.l.b16 %v72
  %v88 = vunpack.c.l.b16 %v73
  %v89 = vunpack.c.l.b16 %v74
  %v90 = vunpack.c.l.b16 %v75
  %v91 = vpack.c.b16 %v88, %v87
  %v92 = vpack.c.b16 %v90, %v89
  %v96 = vsel %vm25, %v71, 0
  %98 = vmatprep.subr.bf16.mxu0 0
  %99 = vmatpush1.bf16.msra.mxu0 %v91
  %100 = vmatprep.subr.bf16.mxu0 0
  %101 = vmatpush1.bf16.msra.mxu0 %v92
  %102 = vmatprep.subr.bf16.mxu0 0
  %103 = vmatpush1.bf16.msra.mxu0 0
  %104 = vmatprep.subr.bf16.mxu0 0
  %105 = vmatpush1.bf16.msra.mxu0 0
  %106 = vmatprep.subr.bf16.mxu0 0
  %107 = vmatpush1.bf16.msra.mxu0 0
  %108 = vmatprep.subr.bf16.mxu0 0
  %109 = vmatpush1.bf16.msra.mxu0 0
  %110 = vmatprep.subr.bf16.mxu0 0
  %111 = vmatpush1.bf16.msra.mxu0 0
  %112 = vmatprep.subr.bf16.mxu0 0
  %113 = vmatpush1.bf16.msra.mxu0 0
  %114 = vmatprep.subr.bf16.mxu0 0
  %115 = vmatpush1.bf16.msra.mxu0 0
  %116 = vmatprep.subr.bf16.mxu0 0
  %117 = vmatpush1.bf16.msra.mxu0 0
  %118 = vmatprep.subr.bf16.mxu0 0
  %119 = vmatpush1.bf16.msra.mxu0 0
  %120 = vmatprep.subr.bf16.mxu0 0
  %121 = vmatpush1.bf16.msra.mxu0 0
  %122 = vmatprep.subr.bf16.mxu0 0
  %123 = vmatpush1.bf16.msra.mxu0 0
  %124 = vmatprep.subr.bf16.mxu0 0
  %125 = vmatpush1.bf16.msra.mxu0 0
  %126 = vmatprep.subr.bf16.mxu0 0
  %127 = vmatpush1.bf16.msra.mxu0 0
  %128 = vmatprep.subr.bf16.mxu0 0
  %129 = vmatpush1.bf16.msra.mxu0 0
  %130 = vmatprep.mubr.bf16.mxu0 0
  %131 = vmatmul.mubr.bf16.gmra.mrb[0].mxu0 %v96
  %v132 = vpop.f32.mrb[0].mxu0
  %v133 = vadd.f32 %v81, %v132
  %v134 = vpop.f32.mrb[0].mxu0
  %v135 = vpop.f32.mrb[0].mxu0
  %v136 = vadd.f32 %v81, %v135
  %v137 = vpop.f32.mrb[0].mxu0
  %138 = vdwg.mxu0
  %v139 = vpack.c.bf16 %v136, %v133
  %v141 = vunpack.c.l.b16 %v139
  %v142 = vunpack.c.h.b16 %v139
  %v143 = vpack.c.b16 %v141, %v141
  %v144 = vpack.c.b16 %v142, %v142
  %vm147 = vcmask 781312
  %148 = vst.msk [vmem:[%s5] sm:$0xf] %vm147, %v143
  %149 = vst.msk [vmem:[%s5 + $0x4] sm:$0xf] %vm147, %v144
  // Predicated region
  $region22: #{gpt2_probe_forward.10} parent=0 // pred_check
    _
  $region23: #{gpt2_probe_forward.10} parent=0 // pred_check_branch
    %151 = sbr.rel (0) target = $region25
  $region24: #{gpt2_probe_forward.10} parent=0 // pred_region
    _
  $region25: #{gpt2_probe_forward.10} parent=0 // pred_fallthru
    _
  // Predicated region
  $region26: #{gpt2_probe_forward.10} parent=0 // pred_check
    _
  $region27: #{gpt2_probe_forward.10} parent=0 // pred_check_branch
    %153 = sbr.rel (0) target = $region29
  $region28: #{gpt2_probe_forward.10} parent=0 // pred_region
    _
  $region29: #{gpt2_probe_forward.10} parent=0 // pred_fallthru
    _

// kernel: gpt2_probe_forward.13
$region0: #{gpt2_probe_forward.13}
  #allocation0 [shape = 'u32[]', space=smem, size = 0x4, offset = 0x4, fixed_abs, tag = 'smem constant byte address 0x4 - core index']
  #allocation1 [shape = 'u32[144,128]{1,0:T(1,128)}', space=vmem, size = 0x12000, scoped, tag = 'internal scratch']
  %s0 = inlined_call_operand.vmem [shape: bf16[16,32], index: 0, kind: input, shape index: {}]
  %s1 = inlined_call_operand.vmem [shape: bf16[32,128], index: 1, kind: input, shape index: {}]
  %s2 = inlined_call_operand.vmem [shape: f32[1,128], index: 2, kind: input, shape index: {}]
  %s3 = inlined_call_operand.vmem [shape: f32[1,32], index: 3, kind: input, shape index: {}]
  %s4 = inlined_call_operand.vmem [shape: f32[1,32], index: 4, kind: input, shape index: {}]
  %s5 = inlined_call_operand.vmem [shape: bf16[16,128], index: 5, kind: output, shape index: {}]
  %s6 = sld [smem:[#allocation0]]
  $region30: #{gpt2_probe_forward.13} parent=0
    _
  %s8 = ssub.s32 1, %s6
  %s9 = scalar_select 0, %s8, %s6
  // Predicated region
  $region2: #{gpt2_probe_forward.13} parent=0 // pred_check
    _
  $region3: #{gpt2_probe_forward.13} parent=0 // pred_check_branch
    %11 = sbr.rel (0) target = $region5
  $region4: #{gpt2_probe_forward.13} parent=0 // pred_region
    _
  $region5: #{gpt2_probe_forward.13} parent=0 // pred_fallthru
    _
  // Predicated region
  $region6: #{gpt2_probe_forward.13} parent=0 // pred_check
    _
  $region7: #{gpt2_probe_forward.13} parent=0 // pred_check_branch
    %13 = sbr.rel (0) target = $region9
  $region8: #{gpt2_probe_forward.13} parent=0 // pred_region
    _
  $region9: #{gpt2_probe_forward.13} parent=0 // pred_fallthru
    _
  // Predicated region
  $region10: #{gpt2_probe_forward.13} parent=0 // pred_check
    _
  $region11: #{gpt2_probe_forward.13} parent=0 // pred_check_branch
    %15 = sbr.rel (0) target = $region13
  $region12: #{gpt2_probe_forward.13} parent=0 // pred_region
    _
  $region13: #{gpt2_probe_forward.13} parent=0 // pred_fallthru
    _
  // Predicated region
  $region14: #{gpt2_probe_forward.13} parent=0 // pred_check
    _
  $region15: #{gpt2_probe_forward.13} parent=0 // pred_check_branch
    %17 = sbr.rel (0) target = $region17
  $region16: #{gpt2_probe_forward.13} parent=0 // pred_region
    _
  $region17: #{gpt2_probe_forward.13} parent=0 // pred_fallthru
    _
  // Predicated region
  $region18: #{gpt2_probe_forward.13} parent=0 // pred_check
    _
  $region19: #{gpt2_probe_forward.13} parent=0 // pred_check_branch
    %19 = sbr.rel (0) target = $region21
  $region20: #{gpt2_probe_forward.13} parent=0 // pred_region
    _
  $region21: #{gpt2_probe_forward.13} parent=0 // pred_fallthru
    _
  %v21 = vld [vmem:[%s0] sm:$0xf]
  %v22 = vld [vmem:[%s0 + $0x4] sm:$0xf]
  %v23 = vunpack.c.l.bf16 %v21
  %v24 = vunpack.c.l.bf16 %v22
  %vm25 = vcmask 261120
  %v26 = vsel %vm25, %v23, 0.0
  %27 = vadd.xlane.f32.xlu0 %v26
  %v28 = vpop.xlane.xlu0 %27
  %v29 = vsel %vm25, %v24, 0.0
  %30 = vadd.xlane.f32.xlu0 %v29
  %v31 = vpop.xlane.xlu0 %30
  %v32 = vrcp.pop 32.0
  %v33 = vmul.f32 %v28, %v32
  %v34 = vmul.f32 %v31, %v32
  %v35 = vsub.f32 %v23, %v33
  %v36 = vsub.f32 %v24, %v34
  %v37 = vmul.f32 %v35, %v35
  %v38 = vmul.f32 %v36, %v36
  %v39 = vsel %vm25, %v37, 0.0
  %40 = vadd.xlane.f32.xlu0 %v39
  %v41 = vpop.xlane.xlu0 %40
  %v42 = vsel %vm25, %v38, 0.0
  %43 = vadd.xlane.f32.xlu0 %v42
  %v44 = vpop.xlane.xlu0 %43
  %v45 = vmul.f32 %v41, %v32
  %v46 = vmul.f32 %v44, %v32
  %v47 = vadd.f32 %v45, 1e-05
  %v48 = vadd.f32 %v46, 1e-05
  %v49 = vrsqrt.pop %v47
  %v50 = vrsqrt.pop %v48
  %v51 = vmul.f32 %v35, %v49
  %v52 = vmul.f32 %v36, %v50
  %v53 = vld [vmem:[%s3] sm:$0x1]
  %v55 = vlaneseq
  %v56 = vshrl.u32 %v55, 7
  %v57 = vsub.s32 0, %v56
  %v58 = vrot.slane %v53, %v57
  %v60 = vmul.f32 %v51, %v58
  %v61 = vmul.f32 %v52, %v58
  %v62 = vld [vmem:[%s4] sm:$0x1]
  %v64 = vlaneseq
  %v65 = vshrl.u32 %v64, 7
  %v66 = vsub.s32 0, %v65
  %v67 = vrot.slane %v62, %v66
  %v69 = vadd.f32 %v60, %v67
  %v70 = vadd.f32 %v61, %v67
  %v71 = vpack.c.bf16 %v70, %v69
  %v72 = vld [vmem:[%s1] sm:$0xf]
  %v73 = vld [vmem:[%s1 + $0x4] sm:$0xf]
  %v74 = vld [vmem:[%s1 + $0x8] sm:$0xf]
  %v75 = vld [vmem:[%s1 + $0xc] sm:$0xf]
  %v76 = vld [vmem:[%s2] sm:$0x1]
  %v78 = vlaneseq
  %v79 = vshrl.u32 %v78, 7
  %v80 = vsub.s32 0, %v79
  %v81 = vrot.slane %v76, %v80
  %v87 = vunpack.c.l.b16 %v72
  %v88 = vunpack.c.l.b16 %v73
  %v89 = vunpack.c.l.b16 %v74
  %v90 = vunpack.c.l.b16 %v75
  %v91 = vpack.c.b16 %v88, %v87
  %v92 = vpack.c.b16 %v90, %v89
  %v96 = vsel %vm25, %v71, 0
  %98 = vmatprep.subr.bf16.mxu0 0
  %99 = vmatpush1.bf16.msra.mxu0 %v91
  %100 = vmatprep.subr.bf16.mxu0 0
  %101 = vmatpush1.bf16.msra.mxu0 %v92
  %102 = vmatprep.subr.bf16.mxu0 0
  %103 = vmatpush1.bf16.msra.mxu0 0
  %104 = vmatprep.subr.bf16.mxu0 0
  %105 = vmatpush1.bf16.msra.mxu0 0
  %106 = vmatprep.subr.bf16.mxu0 0
  %107 = vmatpush1.bf16.msra.mxu0 0
  %108 = vmatprep.subr.bf16.mxu0 0
  %109 = vmatpush1.bf16.msra.mxu0 0
  %110 = vmatprep.subr.bf16.mxu0 0
  %111 = vmatpush1.bf16.msra.mxu0 0
  %112 = vmatprep.subr.bf16.mxu0 0
  %113 = vmatpush1.bf16.msra.mxu0 0
  %114 = vmatprep.subr.bf16.mxu0 0
  %115 = vmatpush1.bf16.msra.mxu0 0
  %116 = vmatprep.subr.bf16.mxu0 0
  %117 = vmatpush1.bf16.msra.mxu0 0
  %118 = vmatprep.subr.bf16.mxu0 0
  %119 = vmatpush1.bf16.msra.mxu0 0
  %120 = vmatprep.subr.bf16.mxu0 0
  %121 = vmatpush1.bf16.msra.mxu0 0
  %122 = vmatprep.subr.bf16.mxu0 0
  %123 = vmatpush1.bf16.msra.mxu0 0
  %124 = vmatprep.subr.bf16.mxu0 0
  %125 = vmatpush1.bf16.msra.mxu0 0
  %126 = vmatprep.subr.bf16.mxu0 0
  %127 = vmatpush1.bf16.msra.mxu0 0
  %128 = vmatprep.subr.bf16.mxu0 0
  %129 = vmatpush1.bf16.msra.mxu0 0
  %130 = vmatprep.mubr.bf16.mxu0 0
  %131 = vmatmul.mubr.bf16.gmra.mrb[0].mxu0 %v96
  %v132 = vpop.f32.mrb[0].mxu0
  %v133 = vadd.f32 %v81, %v132
  %v134 = vpop.f32.mrb[0].mxu0
  %v135 = vpop.f32.mrb[0].mxu0
  %v136 = vadd.f32 %v81, %v135
  %v137 = vpop.f32.mrb[0].mxu0
  %138 = vdwg.mxu0
  %v139 = vmul.f32 %v133, 0.5
  %v140 = vmul.f32 %v136, 0.5
  %v141 = vmul.f32 %v133, 0.044715
  %v142 = vmul.f32 %v136, 0.044715
  %v143 = vmul.f32 %v141, %v133
  %v144 = vmul.f32 %v142, %v136
  %v145 = vmul.f32 %v143, %v133
  %v146 = vmul.f32 %v144, %v136
  %v147 = vadd.f32 %v133, %v145
  %v148 = vadd.f32 %v136, %v146
  %v149 = vmul.f32 %v147, 0.7978846
  %v150 = vmul.f32 %v148, 0.7978846
  %v151 = vtanh.pop %v149
  %v152 = vtanh.pop %v150
  %v153 = vadd.f32 %v151, 1.0
  %v154 = vadd.f32 %v152, 1.0
  %v155 = vmul.f32 %v139, %v153
  %v156 = vmul.f32 %v140, %v154
  %v157 = vpack.c.bf16 %v156, %v155
  %v159 = vunpack.c.l.b16 %v157
  %v160 = vunpack.c.h.b16 %v157
  %v161 = vpack.c.b16 %v159, %v159
  %v162 = vpack.c.b16 %v160, %v160
  %165 = vst [vmem:[%s5] sm:$0xf] %v161
  %166 = vst [vmem:[%s5 + $0x4] sm:$0xf] %v162
  // Predicated region
  $region22: #{gpt2_probe_forward.13} parent=0 // pred_check
    _
  $region23: #{gpt2_probe_forward.13} parent=0 // pred_check_branch
    %168 = sbr.rel (0) target = $region25
  $region24: #{gpt2_probe_forward.13} parent=0 // pred_region
    _
  $region25: #{gpt2_probe_forward.13} parent=0 // pred_fallthru
    _
  // Predicated region
  $region26: #{gpt2_probe_forward.13} parent=0 // pred_check
    _
  $region27: #{gpt2_probe_forward.13} parent=0 // pred_check_branch
    %170 = sbr.rel (0) target = $region29
  $region28: #{gpt2_probe_forward.13} parent=0 // pred_region
    _
  $region29: #{gpt2_probe_forward.13} parent=0 // pred_fallthru
    _

// kernel: gpt2_probe_forward.11
$region0: #{gpt2_probe_forward.11}
  #allocation0 [shape = 'u32[]', space=smem, size = 0x4, offset = 0x4, fixed_abs, tag = 'smem constant byte address 0x4 - core index']
  #allocation1 [shape = 'u32[144,128]{1,0:T(1,128)}', space=vmem, size = 0x12000, scoped, tag = 'internal scratch']
  #allocation2 [shape = 'f32[2,8,1]{2,1,0:T(8,128)}', space=vmem, size = 0x2000, scoped, tag = 'scratch operand']
  #allocation3 [shape = 'f32[2,8,1]{2,1,0:T(8,128)}', space=vmem, size = 0x2000, scoped, tag = 'scratch operand']
  #allocation4 [shape = 'f32[2,8,16]{2,1,0:T(8,128)}', space=vmem, size = 0x2000, scoped, tag = 'scratch operand']
  %s0 = inlined_call_operand.vmem [shape: bf16[3,2,2,8,16], index: 0, kind: input, shape index: {}, may-alias: {0,1,2}]
  %s1 = inlined_call_operand.vmem [shape: bf16[3,2,2,8,16], index: 1, kind: input, shape index: {}, may-alias: {0,1,2}]
  %s2 = inlined_call_operand.vmem [shape: bf16[3,2,2,8,16], index: 2, kind: input, shape index: {}, may-alias: {0,1,2}]
  %s3 = inlined_call_operand.vmem [shape: f32[2,1,8], index: 3, kind: input, shape index: {}]
  %s4 = inlined_call_operand.vmem [shape: bf16[2,8,32], index: 4, kind: output, shape index: {}]
  %s5 = sld [smem:[#allocation0]]
  $region57: #{gpt2_probe_forward.11} parent=0
    _
  %s7 = ssub.s32 1, %s5
  %s8 = scalar_select 0, %s7, %s5
  loop: start=0, step=1, limit=4
  $region2: #{gpt2_probe_forward.11} parent=0 // loop_pre_header
    _
  $region3: #{gpt2_probe_forward.11} parent=0 // loop_header
    %s10 = sphi 0, %s14
    %p11 = scmp.ge.s32.totalorder %s10, 4
    %s17 = sphi 0, %s43
    %s18 = sphi 0, %s39
    %s19 = sphi 0, %s35
    %s20 = sphi 0, %s31
    %s21 = sphi 0, %s17
    %s22 = sphi 0, %s18
    %s23 = sphi 0, %s19
    %s24 = sphi 0, %s20
    %s25 = sphi 0, %s21
    %s26 = sphi 0, %s22
    %s27 = sphi 0, %s23
    %s28 = sphi 0, %s24
    %s50 = sphi 0, %s52
    %s53 = sphi 0, %s50
    %s54 = sphi 0, %s53
    %s70 = sphi 0, %s54
    %s80 = sphi 0, %s82
    %s83 = sphi 0, %s80
    %s84 = sphi 0, %s83
    %s100 = sphi 0, %s84
    %s110 = sphi 0, %s112
    %s113 = sphi 0, %s110
    %s114 = sphi 0, %s113
    %s130 = sphi 0, %s114
    %s138 = sphi 0, %s140
    %s141 = sphi 0, %s138
    %s142 = sphi 0, %s141
    %s158 = sphi 0, %s142
    %s168 = sphi 0, %s170
    %s171 = sphi 0, %s168
    %s172 = sphi 0, %s171
    %s188 = sphi 0, %s172
  $region4: #{gpt2_probe_forward.11} parent=0 // loop_header_branch
    %13 = sbr.rel (%p11) target = $region8
  $region5: #{gpt2_probe_forward.11} parent=0 // loop_body
    %s15 = ssub.s32 %s10, 1
    %s16 = ssub.s32 %s10, 2
    %s29 = sadd.s32 1, %s20
    %p30 = scmp.ge.s32.totalorder %s29, 1
    %s31 = scalar_select %p30, 0, %s29
    %s32 = sadd.s32 1, %s19
    %s33 = scalar_select %p30, %s32, %s19
    %p34 = scmp.ge.s32.totalorder %s33, 1
    %s35 = scalar_select %p34, 0, %s33
    %s36 = sadd.s32 1, %s18
    %s37 = scalar_select %p34, %s36, %s18
    %p38 = scmp.ge.s32.totalorder %s37, 1
    %s39 = scalar_select %p38, 0, %s37
    %s40 = sadd.s32 1, %s17
    %s41 = scalar_select %p38, %s40, %s17
    %p42 = scmp.ge.s32.totalorder %s41, 2
    %s43 = scalar_select %p42, 0, %s41
    %s44 = ssub.s32 %s17, %s43
    %s45 = ssub.s32 %s18, %s39
    %s46 = sor.u32 %s44, %s45
    %s47 = ssub.s32 %s19, %s35
    %s48 = sor.u32 %s46, %s47
    %p49 = scmp.eq.s32.totalorder %s48, 0
    %s51 = sadd.s32 %s50, 1
    %s52 = scalar_select %p49, %s50, %s51
    %p55 = pneg %p49
    %p56 = scmp.eq.s32.totalorder %s10, 1
    %p57 = por %p55, %p56
    %p58 = scmp.ne.s32.totalorder %s50, %s53
    %p59 = scmp.eq.s32.totalorder %s10, 0
    %p60 = por %p58, %p59
    %p61 = scmp.ne.s32.totalorder %s50, %s53
    %p62 = scmp.eq.s32.totalorder %s15, 1
    %p63 = por %p61, %p62
    %p64 = scmp.ne.s32.totalorder %s53, %s54
    %p65 = scmp.eq.s32.totalorder %s15, 0
    %p66 = por %p64, %p65
    %p67 = scmp.ne.s32.totalorder %s53, %s54
    %p68 = scmp.eq.s32.totalorder %s16, 1
    %p69 = por %p67, %p68
    %p71 = scmp.ne.s32.totalorder %s54, %s70
    %p72 = scmp.eq.s32.totalorder %s16, 0
    %p73 = por %p71, %p72
    %s74 = ssub.s32 %s17, %s43
    %s75 = ssub.s32 %s18, %s39
    %s76 = sor.u32 %s74, %s75
    %s77 = ssub.s32 %s20, %s31
    %s78 = sor.u32 %s76, %s77
    %p79 = scmp.eq.s32.totalorder %s78, 0
    %s81 = sadd.s32 %s80, 1
    %s82 = scalar_select %p79, %s80, %s81
    %p85 = pneg %p79
    %p86 = scmp.eq.s32.totalorder %s10, 1
    %p87 = por %p85, %p86
    %p88 = scmp.ne.s32.totalorder %s80, %s83
    %p89 = scmp.eq.s32.totalorder %s10, 0
    %p90 = por %p88, %p89
    %p91 = scmp.ne.s32.totalorder %s80, %s83
    %p92 = scmp.eq.s32.totalorder %s15, 1
    %p93 = por %p91, %p92
    %p94 = scmp.ne.s32.totalorder %s83, %s84
    %p95 = scmp.eq.s32.totalorder %s15, 0
    %p96 = por %p94, %p95
    %p97 = scmp.ne.s32.totalorder %s83, %s84
    %p98 = scmp.eq.s32.totalorder %s16, 1
    %p99 = por %p97, %p98
    %p101 = scmp.ne.s32.totalorder %s84, %s100
    %p102 = scmp.eq.s32.totalorder %s16, 0
    %p103 = por %p101, %p102
    %s104 = ssub.s32 %s17, %s43
    %s105 = ssub.s32 %s18, %s39
    %s106 = sor.u32 %s104, %s105
    %s107 = ssub.s32 %s20, %s31
    %s108 = sor.u32 %s106, %s107
    %p109 = scmp.eq.s32.totalorder %s108, 0
    %s111 = sadd.s32 %s110, 1
    %s112 = scalar_select %p109, %s110, %s111
    %p115 = pneg %p109
    %p116 = scmp.eq.s32.totalorder %s10, 1
    %p117 = por %p115, %p116
    %p118 = scmp.ne.s32.totalorder %s110, %s113
    %p119 = scmp.eq.s32.totalorder %s10, 0
    %p120 = por %p118, %p119
    %p121 = scmp.ne.s32.totalorder %s110, %s113
    %p122 = scmp.eq.s32.totalorder %s15, 1
    %p123 = por %p121, %p122
    %p124 = scmp.ne.s32.totalorder %s113, %s114
    %p125 = scmp.eq.s32.totalorder %s15, 0
    %p126 = por %p124, %p125
    %p127 = scmp.ne.s32.totalorder %s113, %s114
    %p128 = scmp.eq.s32.totalorder %s16, 1
    %p129 = por %p127, %p128
    %p131 = scmp.ne.s32.totalorder %s114, %s130
    %p132 = scmp.eq.s32.totalorder %s16, 0
    %p133 = por %p131, %p132
    %s134 = ssub.s32 %s17, %s43
    %s135 = ssub.s32 %s20, %s31
    %s136 = sor.u32 %s134, %s135
    %p137 = scmp.eq.s32.totalorder %s136, 0
    %s139 = sadd.s32 %s138, 1
    %s140 = scalar_select %p137, %s138, %s139
    %p143 = pneg %p137
    %p144 = scmp.eq.s32.totalorder %s10, 1
    %p145 = por %p143, %p144
    %p146 = scmp.ne.s32.totalorder %s138, %s141
    %p147 = scmp.eq.s32.totalorder %s10, 0
    %p148 = por %p146, %p147
    %p149 = scmp.ne.s32.totalorder %s138, %s141
    %p150 = scmp.eq.s32.totalorder %s15, 1
    %p151 = por %p149, %p150
    %p152 = scmp.ne.s32.totalorder %s141, %s142
    %p153 = scmp.eq.s32.totalorder %s15, 0
    %p154 = por %p152, %p153
    %p155 = scmp.ne.s32.totalorder %s141, %s142
    %p156 = scmp.eq.s32.totalorder %s16, 1
    %p157 = por %p155, %p156
    %p159 = scmp.ne.s32.totalorder %s142, %s158
    %p160 = scmp.eq.s32.totalorder %s16, 0
    %p161 = por %p159, %p160
    %s162 = ssub.s32 %s17, %s43
    %s163 = ssub.s32 %s19, %s35
    %s164 = sor.u32 %s162, %s163
    %s165 = ssub.s32 %s18, %s39
    %s166 = sor.u32 %s164, %s165
    %p167 = scmp.eq.s32.totalorder %s166, 0
    %s169 = sadd.s32 %s168, 1
    %s170 = scalar_select %p167, %s168, %s169
    %p173 = pneg %p167
    %p174 = scmp.eq.s32.totalorder %s10, 1
    %p175 = por %p173, %p174
    %p176 = scmp.ne.s32.totalorder %s168, %s171
    %p177 = scmp.eq.s32.totalorder %s10, 0
    %p178 = por %p176, %p177
    %p179 = scmp.ne.s32.totalorder %s168, %s171
    %p180 = scmp.eq.s32.totalorder %s15, 1
    %p181 = por %p179, %p180
    %p182 = scmp.ne.s32.totalorder %s171, %s172
    %p183 = scmp.eq.s32.totalorder %s15, 0
    %p184 = por %p182, %p183
    %p185 = scmp.ne.s32.totalorder %s171, %s172
    %p186 = scmp.eq.s32.totalorder %s16, 1
    %p187 = por %p185, %p186
    %p189 = scmp.ne.s32.totalorder %s172, %s188
    %p190 = scmp.eq.s32.totalorder %s16, 0
    %p191 = por %p189, %p190
    %p192 = scmp.le.s32.totalorder 1, %s10
    %p193 = scmp.lt.s32.totalorder %s10, 3
    %p194 = pnand %p192, %p193
    %p195 = pneg %p194
    // Predicated region
    $region9: #{gpt2_probe_forward.11} parent=5 // pred_check
      _
    $region10: #{gpt2_probe_forward.11} parent=5 // pred_check_branch
      %197 = sbr.rel (%p194) target = $region12
    $region11: #{gpt2_probe_forward.11} parent=5 // pred_region
      %s198 = ssub.s32 %s10, 1
    $region12: #{gpt2_probe_forward.11} parent=5 // pred_fallthru
      _
    %p199 = scmp.lt.s32.totalorder %s10, 2
    // Predicated region
    $region13: #{gpt2_probe_forward.11} parent=5 // pred_check
      %p200 = pneg %p199
    $region14: #{gpt2_probe_forward.11} parent=5 // pred_check_branch
      %202 = sbr.rel (%p200) target = $region16
    $region15: #{gpt2_probe_forward.11} parent=5 // pred_region
      // Predicated region
      $region17: #{gpt2_probe_forward.11} parent=15 // pred_check
        %p203 = pneg %p60
      $region18: #{gpt2_probe_forward.11} parent=15 // pred_check_branch
        %205 = sbr.rel (%p203) target = $region20
      $region19: #{gpt2_probe_forward.11} parent=15 // pred_region
        %s206 = smul.u32 2, %s18
        %p207 = scmp.lt.s32.totalorder %s17, 1
        %s208 = scalar_select %p207, %s17, 1
        %p209 = scmp.lt.s32.totalorder %s206, 1
        %s210 = scalar_select %p209, %s206, 1
        %p211 = scmp.lt.s32.totalorder %s19, 0
        %s212 = scalar_select %p211, %s19, 0
        %s213 = sadd.s32 %s212, %s210
        %s214 = smul.addr %s208, 2
        %s215 = sadd.s32 %s213, %s214
        %s216 = smul.addr %s215, 4
        %s217 = scalar_lea.vmem %s0, %s216
        %s218 = smul.u32 2, %s18
      $region20: #{gpt2_probe_forward.11} parent=15 // pred_fallthru
        _
      // Predicated region
      $region21: #{gpt2_probe_forward.11} parent=15 // pred_check
        %p219 = pneg %p90
      $region22: #{gpt2_probe_forward.11} parent=15 // pred_check_branch
        %221 = sbr.rel (%p219) target = $region24
      $region23: #{gpt2_probe_forward.11} parent=15 // pred_region
        %s222 = smul.u32 2, %s18
        %p223 = scmp.lt.s32.totalorder %s17, 1
        %s224 = scalar_select %p223, %s17, 1
        %p225 = scmp.lt.s32.totalorder %s222, 1
        %s226 = scalar_select %p225, %s222, 1
        %p227 = scmp.lt.s32.totalorder %s20, 0
        %s228 = scalar_select %p227, %s20, 0
        %s229 = sadd.s32 %s228, %s226
        %s230 = smul.addr %s224, 2
        %s231 = sadd.s32 %s229, %s230
        %s232 = sadd.s32 %s231, 4
        %s233 = smul.addr %s232, 4
        %s234 = scalar_lea.vmem %s1, %s233
        %s235 = smul.u32 2, %s18
      $region24: #{gpt2_probe_forward.11} parent=15 // pred_fallthru
        _
      // Predicated region
      $region25: #{gpt2_probe_forward.11} parent=15 // pred_check
        %p236 = pneg %p120
      $region26: #{gpt2_probe_forward.11} parent=15 // pred_check_branch
        %238 = sbr.rel (%p236) target = $region28
      $region27: #{gpt2_probe_forward.11} parent=15 // pred_region
        %s239 = smul.u32 2, %s18
        %p240 = scmp.lt.s32.totalorder %s17, 1
        %s241 = scalar_select %p240, %s17, 1
        %p242 = scmp.lt.s32.totalorder %s239, 1
        %s243 = scalar_select %p242, %s239, 1
        %p244 = scmp.lt.s32.totalorder %s20, 0
        %s245 = scalar_select %p244, %s20, 0
        %s246 = sadd.s32 %s245, %s243
        %s247 = smul.addr %s241, 2
        %s248 = sadd.s32 %s246, %s247
        %s249 = sadd.s32 %s248, 8
        %s250 = smul.addr %s249, 4
        %s251 = scalar_lea.vmem %s2, %s250
        %s252 = smul.u32 2, %s18
      $region28: #{gpt2_probe_forward.11} parent=15 // pred_fallthru
        _
      // Predicated region
      $region29: #{gpt2_probe_forward.11} parent=15 // pred_check
        %p253 = pneg %p148
      $region30: #{gpt2_probe_forward.11} parent=15 // pred_check_branch
        %255 = sbr.rel (%p253) target = $region32
      $region31: #{gpt2_probe_forward.11} parent=15 // pred_region
        %p256 = scmp.lt.s32.totalorder %s17, 1
        %s257 = scalar_select %p256, %s17, 1
        %p258 = scmp.lt.s32.totalorder %s20, 0
        %s259 = scalar_select %p258, %s20, 0
        %s260 = sadd.s32 %s259, %s257
        %s261 = scalar_lea.vmem %s3, %s260
      $region32: #{gpt2_probe_forward.11} parent=15 // pred_fallthru
        _
    $region16: #{gpt2_probe_forward.11} parent=5 // pred_fallthru
      _
    %p262 = scmp.le.s32.totalorder 1, %s10
    %p263 = scmp.lt.s32.totalorder %s10, 3
    %p264 = pnand %p262, %p263
    %p265 = pneg %p264
    // Predicated region
    $region33: #{gpt2_probe_forward.11} parent=5 // pred_check
      _
    $region34: #{gpt2_probe_forward.11} parent=5 // pred_check_branch
      %267 = sbr.rel (%p264) target = $region36
    $region35: #{gpt2_probe_forward.11} parent=5 // pred_region
      %s268 = ssub.s32 %s10, 1
      %s269 = smul.u32 2, %s22
      %p270 = scmp.lt.s32.totalorder %s21, 1
      %s271 = scalar_select %p270, %s21, 1
      %p272 = scmp.lt.s32.totalorder %s269, 1
      %s273 = scalar_select %p272, %s269, 1
      %p274 = scmp.lt.s32.totalorder %s23, 0
      %s275 = scalar_select %p274, %s23, 0
      %s276 = sadd.s32 %s275, %s273
      %s277 = smul.addr %s271, 2
      %s278 = sadd.s32 %s276, %s277
      %s279 = smul.addr %s278, 4
      %s280 = scalar_lea.vmem %s0, %s279
      %p281 = pneg %p66
      %p282 = pneg %p63
      %s283 = smul.u32 2, %s22
      %p284 = scmp.lt.s32.totalorder %s21, 1
      %s285 = scalar_select %p284, %s21, 1
      %p286 = scmp.lt.s32.totalorder %s283, 1
      %s287 = scalar_select %p286, %s283, 1
      %p288 = scmp.lt.s32.totalorder %s24, 0
      %s289 = scalar_select %p288, %s24, 0
      %s290 = sadd.s32 %s289, %s287
      %s291 = smul.addr %s285, 2
      %s292 = sadd.s32 %s290, %s291
      %s293 = sadd.s32 %s292, 4
      %s294 = smul.addr %s293, 4
      %s295 = scalar_lea.vmem %s1, %s294
      %p296 = pneg %p96
      %p297 = pneg %p93
      %s298 = smul.u32 2, %s22
      %p299 = scmp.lt.s32.totalorder %s21, 1
      %s300 = scalar_select %p299, %s21, 1
      %p301 = scmp.lt.s32.totalorder %s298, 1
      %s302 = scalar_select %p301, %s298, 1
      %p303 = scmp.lt.s32.totalorder %s24, 0
      %s304 = scalar_select %p303, %s24, 0
      %s305 = sadd.s32 %s304, %s302
      %s306 = smul.addr %s300, 2
      %s307 = sadd.s32 %s305, %s306
      %s308 = sadd.s32 %s307, 8
      %s309 = smul.addr %s308, 4
      %s310 = scalar_lea.vmem %s2, %s309
      %p311 = pneg %p126
      %p312 = pneg %p123
      %p313 = scmp.lt.s32.totalorder %s21, 1
      %s314 = scalar_select %p313, %s21, 1
      %p315 = scmp.lt.s32.totalorder %s24, 0
      %s316 = scalar_select %p315, %s24, 0
      %s317 = sadd.s32 %s316, %s314
      %s318 = scalar_lea.vmem %s3, %s317
      %p319 = pneg %p154
      %p320 = pneg %p151
      %p321 = pneg %p184
      %p322 = pneg %p181
      %p323 = scmp.lt.s32.totalorder %s21, 1
      %s324 = scalar_select %p323, %s21, 1
      %p325 = scmp.lt.s32.totalorder %s23, 0
      %s326 = scalar_select %p325, %s23, 0
      %p327 = scmp.lt.s32.totalorder %s22, 0
      %s328 = scalar_select %p327, %s22, 0
      %s329 = sadd.s32 %s328, %s326
      %s330 = sadd.s32 %s329, %s324
      %s331 = smul.addr %s330, 4
      %s332 = scalar_lea.vmem %s4, %s331
      %s333 = smul.u32 2, %s22
      %p334 = scmp.lt.s32.totalorder %s21, 1
      %s335 = scalar_select %p334, %s21, 1
      %p336 = scmp.lt.s32.totalorder %s333, 1
      %s337 = scalar_select %p336, %s333, 1
      %p338 = scmp.lt.s32.totalorder %s23, 0
      %s339 = scalar_select %p338, %s23, 0
      %s340 = sadd.s32 %s339, %s337
      %s341 = smul.addr %s335, 2
      %s342 = sadd.s32 %s340, %s341
      %s343 = smul.addr %s342, 4
      %s344 = scalar_lea.vmem %s0, %s343
      %s345 = smul.u32 2, %s22
      %s346 = smul.u32 2, %s22
      %p347 = scmp.lt.s32.totalorder %s21, 1
      %s348 = scalar_select %p347, %s21, 1
      %p349 = scmp.lt.s32.totalorder %s346, 1
      %s350 = scalar_select %p349, %s346, 1
      %p351 = scmp.lt.s32.totalorder %s24, 0
      %s352 = scalar_select %p351, %s24, 0
      %s353 = sadd.s32 %s352, %s350
      %s354 = smul.addr %s348, 2
      %s355 = sadd.s32 %s353, %s354
      %s356 = sadd.s32 %s355, 4
      %s357 = smul.addr %s356, 4
      %s358 = scalar_lea.vmem %s1, %s357
      %s359 = smul.u32 2, %s22
      %s360 = smul.u32 2, %s22
      %p361 = scmp.lt.s32.totalorder %s21, 1
      %s362 = scalar_select %p361, %s21, 1
      %p363 = scmp.lt.s32.totalorder %s360, 1
      %s364 = scalar_select %p363, %s360, 1
      %p365 = scmp.lt.s32.totalorder %s24, 0
      %s366 = scalar_select %p365, %s24, 0
      %s367 = sadd.s32 %s366, %s364
      %s368 = smul.addr %s362, 2
      %s369 = sadd.s32 %s367, %s368
      %s370 = sadd.s32 %s369, 8
      %s371 = smul.addr %s370, 4
      %s372 = scalar_lea.vmem %s2, %s371
      %s373 = smul.u32 2, %s22
      %p374 = scmp.lt.s32.totalorder %s21, 1
      %s375 = scalar_select %p374, %s21, 1
      %p376 = scmp.lt.s32.totalorder %s24, 0
      %s377 = scalar_select %p376, %s24, 0
      %s378 = sadd.s32 %s377, %s375
      %s379 = scalar_lea.vmem %s3, %s378
      %p380 = scmp.lt.s32.totalorder %s21, 1
      %s381 = scalar_select %p380, %s21, 1
      %p382 = scmp.lt.s32.totalorder %s23, 0
      %s383 = scalar_select %p382, %s23, 0
      %p384 = scmp.lt.s32.totalorder %s22, 0
      %s385 = scalar_select %p384, %s22, 0
      %s386 = sadd.s32 %s385, %s383
      %s387 = sadd.s32 %s386, %s381
      %s388 = smul.addr %s387, 4
      %s389 = scalar_lea.vmem %s4, %s388
      %p391 = scmp.eq.s32.totalorder %s24, 0
      // Predicated region
      $region37: #{gpt2_probe_forward.11} parent=35 // pred_check
        %p392 = pneg %p391
      $region38: #{gpt2_probe_forward.11} parent=35 // pred_check_branch
        %394 = sbr.rel (%p392) target = $region40
      $region39: #{gpt2_probe_forward.11} parent=35 // pred_region
        %vm395 = vcmask 7168
        %396 = vst.msk [vmem:[#allocation2] sm:$0xff] %vm395, -1e+30
        %397 = vst.msk [vmem:[#allocation2 + $0x8] sm:$0xff] %vm395, -1e+30
        %398 = vst.msk [vmem:[#allocation3] sm:$0xff] %vm395, 0.0
        %399 = vst.msk [vmem:[#allocation3 + $0x8] sm:$0xff] %vm395, 0.0
        %vm400 = vcmask 130048
        %401 = vst.msk [vmem:[#allocation4] sm:$0xff] %vm400, 0.0
        %402 = vst.msk [vmem:[#allocation4 + $0x8] sm:$0xff] %vm400, 0.0
      $region40: #{gpt2_probe_forward.11} parent=35 // pred_fallthru
        _
      %v403 = vlaneseq
      %v404 = vshrl.u32 %v403, 7
      %s405 = smul.u32 %s23, 8
      %v406 = vstv %s405
      %v407 = vadd.s32 %v404, %v406
      %v408 = vlaneseq
      %v409 = vand.u32 %v408, 127
      %s410 = smul.u32 %s24, 8
      %v411 = vstv %s410
      %v412 = vadd.s32 %v409, %v411
      %vm413 = vcmp.le.s32.totalorder %v412, %v407
      %v414 = vld [vmem:[%s379] sm:$0x1]
      %v415 = vld [vmem:[%s344] sm:$0xf]
      %v416 = vld [vmem:[%s358] sm:$0xf]
      %v417 = vld [vmem:[%s372] sm:$0xf]
      %vm418 = vcmask 130048
      %v420 = vsel %vm418, %v415, 0
      %v423 = vsel %vm418, %v416, 0
      %425 = vmatprep.subr.bf16.mxu0 0
      %426 = vmatpush1.bf16.xpose.msra.mxu0 %v423
      %427 = vmatprep.subr.bf16.mxu0 0
      %428 = vmatpush1.bf16.xpose.msra.mxu0 0
      %429 = vmatprep.subr.bf16.mxu0 0
      %430 = vmatpush1.bf16.xpose.msra.mxu0 0
      %431 = vmatprep.subr.bf16.mxu0 0
      %432 = vmatpush1.bf16.xpose.msra.mxu0 0
      %433 = vmatprep.subr.bf16.mxu0 0
      %434 = vmatpush1.bf16.xpose.msra.mxu0 0
      %435 = vmatprep.subr.bf16.mxu0 0
      %436 = vmatpush1.bf16.xpose.msra.mxu0 0
      %437 = vmatprep.subr.bf16.mxu0 0
      %438 = vmatpush1.bf16.xpose.msra.mxu0 0
      %439 = vmatprep.subr.bf16.mxu0 0
      %440 = vmatpush1.bf16.xpose.msra.mxu0 0
      %441 = vmatprep.subr.bf16.mxu0 0
      %442 = vmatpush1.bf16.xpose.msra.mxu0 0
      %443 = vmatprep.subr.bf16.mxu0 0
      %444 = vmatpush1.bf16.xpose.msra.mxu0 0
      %445 = vmatprep.subr.bf16.mxu0 0
      %446 = vmatpush1.bf16.xpose.msra.mxu0 0
      %447 = vmatprep.subr.bf16.mxu0 0
      %448 = vmatpush1.bf16.xpose.msra.mxu0 0
      %449 = vmatprep.subr.bf16.mxu0 0
      %450 = vmatpush1.bf16.xpose.msra.mxu0 0
      %451 = vmatprep.subr.bf16.mxu0 0
      %452 = vmatpush1.bf16.xpose.msra.mxu0 0
      %453 = vmatprep.subr.bf16.mxu0 0
      %454 = vmatpush1.bf16.xpose.msra.mxu0 0
      %455 = vmatprep.subr.bf16.mxu0 0
      %456 = vmatpush1.bf16.xpose.msra.mxu0 0
      %457 = vmatprep.mubr.bf16.mxu0 0
      %458 = vmatmul.mubr.bf16.gmra.mrb[0].mxu0 %v420
      %v459 = vpop.f32.mrb[0].mxu0
      %v460 = vadd.f32 0.0, %v459
      %v461 = vpop.f32.mrb[0].mxu0
      %v462 = vpop.f32.mrb[0].mxu0
      %v463 = vpop.f32.mrb[0].mxu0
      %464 = vdwg.mxu0
      %v465 = vmul.f32 %v460, 0.25
      %v466 = vsel %vm413, %v465, -1e+09
      %v468 = vlaneseq
      %v469 = vshrl.u32 %v468, 7
      %v470 = vsub.s32 0, %v469
      %v471 = vrot.slane %v414, %v470
      %v473 = vadd.f32 %v466, %v471
      %v474 = vld [vmem:[#allocation2] sm:$0xff]
      %vm475 = vcmask 64512
      %v476 = vsel %vm475, %v473, -inf
      %477 = vmax.xlane.f32.xlu0 %v476
      %v478 = vpop.xlane.xlu0 %477
      %v479 = vmax.f32 %v474, %v478
      %v480 = vsub.f32 %v474, %v479
      %v481 = vmul.f32 %v480, 1.442695
      %v482 = vpow.pop %v481
      %484 = vset.pattern.permute.xlu0 0
      %485 = vperm.xlu0 %484, %v479
      %v486 = vpop.permute.xlu0 %485
      %v488 = vsub.f32 %v473, %v486
      %v489 = vmul.f32 %v488, 1.442695
      %v490 = vpow.pop %v489
      %v491 = vld [vmem:[#allocation3] sm:$0xff]
      %v492 = vmul.f32 %v482, %v491
      %v493 = vsel %vm475, %v490, 0.0
      %494 = vadd.xlane.f32.xlu0 %v493
      %v495 = vpop.xlane.xlu0 %494
      %v496 = vadd.f32 %v492, %v495
      %vm497 = vcmask 7168
      %498 = vst.msk [vmem:[#allocation3] sm:$0xff] %vm497, %v496
      %v499 = vld [vmem:[#allocation4] sm:$0xff]
      %501 = vset.pattern.permute.xlu0 0
      %502 = vperm.xlu0 %501, %v482
      %v503 = vpop.permute.xlu0 %502
      %v505 = vmul.f32 %v503, %v499
      %v506 = vpack.c.bf16 %v490, %v490
      %v508 = vsel %vm475, %v506, 0
      %vm510 = vcmask 1043456
      %v512 = vsel %vm510, %v417, 0
      %514 = vmatprep.subr.bf16.mxu0 0
      %515 = vmatpush1.bf16.msra.mxu0 %v512
      %516 = vmatprep.subr.bf16.mxu0 0
      %517 = vmatpush1.bf16.msra.mxu0 0
      %518 = vmatprep.subr.bf16.mxu0 0
      %519 = vmatpush1.bf16.msra.mxu0 0
      %520 = vmatprep.subr.bf16.mxu0 0
      %521 = vmatpush1.bf16.msra.mxu0 0
      %522 = vmatprep.subr.bf16.mxu0 0
      %523 = vmatpush1.bf16.msra.mxu0 0
      %524 = vmatprep.subr.bf16.mxu0 0
      %525 = vmatpush1.bf16.msra.mxu0 0
      %526 = vmatprep.subr.bf16.mxu0 0
      %527 = vmatpush1.bf16.msra.mxu0 0
      %528 = vmatprep.subr.bf16.mxu0 0
      %529 = vmatpush1.bf16.msra.mxu0 0
      %530 = vmatprep.subr.bf16.mxu0 0
      %531 = vmatpush1.bf16.msra.mxu0 0
      %532 = vmatprep.subr.bf16.mxu0 0
      %533 = vmatpush1.bf16.msra.mxu0 0
      %534 = vmatprep.subr.bf16.mxu0 0
      %535 = vmatpush1.bf16.msra.mxu0 0
      %536 = vmatprep.subr.bf16.mxu0 0
      %537 = vmatpush1.bf16.msra.mxu0 0
      %538 = vmatprep.subr.bf16.mxu0 0
      %539 = vmatpush1.bf16.msra.mxu0 0
      %540 = vmatprep.subr.bf16.mxu0 0
      %541 = vmatpush1.bf16.msra.mxu0 0
      %542 = vmatprep.subr.bf16.mxu0 0
      %543 = vmatpush1.bf16.msra.mxu0 0
      %544 = vmatprep.subr.bf16.mxu0 0
      %545 = vmatpush1.bf16.msra.mxu0 0
      %546 = vmatprep.mubr.bf16.mxu0 0
      %547 = vmatmul.mubr.bf16.gmra.mrb[0].mxu0 %v508
      %v548 = vpop.f32.mrb[0].mxu0
      %v549 = vadd.f32 0.0, %v548
      %v550 = vpop.f32.mrb[0].mxu0
      %v551 = vpop.f32.mrb[0].mxu0
      %v552 = vpop.f32.mrb[0].mxu0
      %553 = vdwg.mxu0
      %v554 = vadd.f32 %v505, %v549
      %555 = vst.msk [vmem:[#allocation4] sm:$0xff] %vm418, %v554
      %556 = vst.msk [vmem:[#allocation2] sm:$0xff] %vm497, %v479
      %s557 = scalar_lea.vmem %s344, 4
      %v558 = vld [vmem:[%s557] sm:$0xf]
      %s559 = scalar_lea.vmem %s358, 4
      %v560 = vld [vmem:[%s559] sm:$0xf]
      %s561 = scalar_lea.vmem %s372, 4
      %v562 = vld [vmem:[%s561] sm:$0xf]
      %v564 = vsel %vm418, %v558, 0
      %v567 = vsel %vm418, %v560, 0
      %569 = vmatprep.subr.bf16.mxu0 0
      %570 = vmatpush1.bf16.xpose.msra.mxu0 %v567
      %571 = vmatprep.subr.bf16.mxu0 0
      %572 = vmatpush1.bf16.xpose.msra.mxu0 0
      %573 = vmatprep.subr.bf16.mxu0 0
      %574 = vmatpush1.bf16.xpose.msra.mxu0 0
      %575 = vmatprep.subr.bf16.mxu0 0
      %576 = vmatpush1.bf16.xpose.msra.mxu0 0
      %577 = vmatprep.subr.bf16.mxu0 0
      %578 = vmatpush1.bf16.xpose.msra.mxu0 0
      %579 = vmatprep.subr.bf16.mxu0 0
      %580 = vmatpush1.bf16.xpose.msra.mxu0 0
      %581 = vmatprep.subr.bf16.mxu0 0
      %582 = vmatpush1.bf16.xpose.msra.mxu0 0
      %583 = vmatprep.subr.bf16.mxu0 0
      %584 = vmatpush1.bf16.xpose.msra.mxu0 0
      %585 = vmatprep.subr.bf16.mxu0 0
      %586 = vmatpush1.bf16.xpose.msra.mxu0 0
      %587 = vmatprep.subr.bf16.mxu0 0
      %588 = vmatpush1.bf16.xpose.msra.mxu0 0
      %589 = vmatprep.subr.bf16.mxu0 0
      %590 = vmatpush1.bf16.xpose.msra.mxu0 0
      %591 = vmatprep.subr.bf16.mxu0 0
      %592 = vmatpush1.bf16.xpose.msra.mxu0 0
      %593 = vmatprep.subr.bf16.mxu0 0
      %594 = vmatpush1.bf16.xpose.msra.mxu0 0
      %595 = vmatprep.subr.bf16.mxu0 0
      %596 = vmatpush1.bf16.xpose.msra.mxu0 0
      %597 = vmatprep.subr.bf16.mxu0 0
      %598 = vmatpush1.bf16.xpose.msra.mxu0 0
      %599 = vmatprep.subr.bf16.mxu0 0
      %600 = vmatpush1.bf16.xpose.msra.mxu0 0
      %601 = vmatprep.mubr.bf16.mxu0 0
      %602 = vmatmul.mubr.bf16.gmra.mrb[0].mxu0 %v564
      %v603 = vpop.f32.mrb[0].mxu0
      %v604 = vadd.f32 0.0, %v603
      %v605 = vpop.f32.mrb[0].mxu0
      %v606 = vpop.f32.mrb[0].mxu0
      %v607 = vpop.f32.mrb[0].mxu0
      %608 = vdwg.mxu0
      %v609 = vmul.f32 %v604, 0.25
      %v610 = vsel %vm413, %v609, -1e+09
      %v611 = vadd.f32 %v610, %v471
      %s612 = scalar_lea.vmem [#allocation2], 8
      %v613 = vld [vmem:[%s612] sm:$0xff]
      %v614 = vsel %vm475, %v611, -inf
      %615 = vmax.xlane.f32.xlu0 %v614
      %v616 = vpop.xlane.xlu0 %615
      %v617 = vmax.f32 %v613, %v616
      %v618 = vsub.f32 %v613, %v617
      %v619 = vmul.f32 %v618, 1.442695
      %v620 = vpow.pop %v619
      %622 = vset.pattern.permute.xlu0 0
      %623 = vperm.xlu0 %622, %v617
      %v624 = vpop.permute.xlu0 %623
      %v626 = vsub.f32 %v611, %v624
      %v627 = vmul.f32 %v626, 1.442695
      %v628 = vpow.pop %v627
      %s629 = scalar_lea.vmem [#allocation3], 8
      %v630 = vld [vmem:[%s629] sm:$0xff]
      %v631 = vmul.f32 %v620, %v630
      %v632 = vsel %vm475, %v628, 0.0
      %633 = vadd.xlane.f32.xlu0 %v632
      %v634 = vpop.xlane.xlu0 %633
      %v635 = vadd.f32 %v631, %v634
      %636 = vst.msk [vmem:[%s629] sm:$0xff] %vm497, %v635
      %s637 = scalar_lea.vmem [#allocation4], 8
      %v638 = vld [vmem:[%s637] sm:$0xff]
      %640 = vset.pattern.permute.xlu0 0
      %641 = vperm.xlu0 %640, %v620
      %v642 = vpop.permute.xlu0 %641
      %v644 = vmul.f32 %v642, %v638
      %v645 = vpack.c.bf16 %v628, %v628
      %v647 = vsel %vm475, %v645, 0
      %v650 = vsel %vm510, %v562, 0
      %652 = vmatprep.subr.bf16.mxu0 0
      %653 = vmatpush1.bf16.msra.mxu0 %v650
      %654 = vmatprep.subr.bf16.mxu0 0
      %655 = vmatpush1.bf16.msra.mxu0 0
      %656 = vmatprep.subr.bf16.mxu0 0
      %657 = vmatpush1.bf16.msra.mxu0 0
      %658 = vmatprep.subr.bf16.mxu0 0
      %659 = vmatpush1.bf16.msra.mxu0 0
      %660 = vmatprep.subr.bf16.mxu0 0
      %661 = vmatpush1.bf16.msra.mxu0 0
      %662 = vmatprep.subr.bf16.mxu0 0
      %663 = vmatpush1.bf16.msra.mxu0 0
      %664 = vmatprep.subr.bf16.mxu0 0
      %665 = vmatpush1.bf16.msra.mxu0 0
      %666 = vmatprep.subr.bf16.mxu0 0
      %667 = vmatpush1.bf16.msra.mxu0 0
      %668 = vmatprep.subr.bf16.mxu0 0
      %669 = vmatpush1.bf16.msra.mxu0 0
      %670 = vmatprep.subr.bf16.mxu0 0
      %671 = vmatpush1.bf16.msra.mxu0 0
      %672 = vmatprep.subr.bf16.mxu0 0
      %673 = vmatpush1.bf16.msra.mxu0 0
      %674 = vmatprep.subr.bf16.mxu0 0
      %675 = vmatpush1.bf16.msra.mxu0 0
      %676 = vmatprep.subr.bf16.mxu0 0
      %677 = vmatpush1.bf16.msra.mxu0 0
      %678 = vmatprep.subr.bf16.mxu0 0
      %679 = vmatpush1.bf16.msra.mxu0 0
      %680 = vmatprep.subr.bf16.mxu0 0
      %681 = vmatpush1.bf16.msra.mxu0 0
      %682 = vmatprep.subr.bf16.mxu0 0
      %683 = vmatpush1.bf16.msra.mxu0 0
      %684 = vmatprep.mubr.bf16.mxu0 0
      %685 = vmatmul.mubr.bf16.gmra.mrb[0].mxu0 %v647
      %v686 = vpop.f32.mrb[0].mxu0
      %v687 = vadd.f32 0.0, %v686
      %v688 = vpop.f32.mrb[0].mxu0
      %v689 = vpop.f32.mrb[0].mxu0
      %v690 = vpop.f32.mrb[0].mxu0
      %691 = vdwg.mxu0
      %v692 = vadd.f32 %v644, %v687
      %693 = vst.msk [vmem:[%s637] sm:$0xff] %vm418, %v692
      %694 = vst.msk [vmem:[%s612] sm:$0xff] %vm497, %v617
      // Predicated region
      $region41: #{gpt2_probe_forward.11} parent=35 // pred_check
        %p695 = pneg %p391
      $region42: #{gpt2_probe_forward.11} parent=35 // pred_check_branch
        %697 = sbr.rel (%p695) target = $region44
      $region43: #{gpt2_probe_forward.11} parent=35 // pred_region
        %v698 = vld [vmem:[#allocation4] sm:$0xff]
        %v699 = vld [vmem:[#allocation3] sm:$0xff]
        %v700 = vrcp.pop %v699
        %702 = vset.pattern.permute.xlu0 0
        %703 = vperm.xlu0 %702, %v700
        %v704 = vpop.permute.xlu0 %703
        %v706 = vmul.f32 %v698, %v704
        %v707 = vld [vmem:[%s637] sm:$0xff]
        %v708 = vld [vmem:[%s629] sm:$0xff]
        %v709 = vrcp.pop %v708
        %711 = vset.pattern.permute.xlu0 0
        %712 = vperm.xlu0 %711, %v709
        %v713 = vpop.permute.xlu0 %712
        %v715 = vmul.f32 %v707, %v713
        %717 = vrot.lane.b32.xlu0 %v715, 16
        %v718 = vpop.permute.xlu0 %717
        %v720 = vsel %vm418, %v706, %v718
        %v721 = vpack.c.bf16 %v720, %v720
        %vm722 = vcmask 257024
        %723 = vst.msk [vmem:[%s389] sm:$0xf] %vm722, %v721
      $region44: #{gpt2_probe_forward.11} parent=35 // pred_fallthru
        _
      %p724 = scmp.lt.s32.totalorder %s21, 1
      %s725 = scalar_select %p724, %s21, 1
      %p726 = scmp.lt.s32.totalorder %s23, 0
      %s727 = scalar_select %p726, %s23, 0
      %p728 = scmp.lt.s32.totalorder %s22, 0
      %s729 = scalar_select %p728, %s22, 0
      %s730 = sadd.s32 %s729, %s727
      %s731 = sadd.s32 %s730, %s725
      %s732 = smul.addr %s731, 4
      %s733 = scalar_lea.vmem %s4, %s732
      // Predicated region
      $region45: #{gpt2_probe_forward.11} parent=35 // pred_check
        %p734 = pneg %p181
      $region46: #{gpt2_probe_forward.11} parent=35 // pred_check_branch
        %736 = sbr.rel (%p734) target = $region48
      $region47: #{gpt2_probe_forward.11} parent=35 // pred_region
        _
      $region48: #{gpt2_probe_forward.11} parent=35 // pred_fallthru
        _
    $region36: #{gpt2_probe_forward.11} parent=5 // pred_fallthru
      _
    %p737 = scmp.le.s32.totalorder 2, %s10
    // Predicated region
    $region49: #{gpt2_probe_forward.11} parent=5 // pred_check
      %p738 = pneg %p737
    $region50: #{gpt2_probe_forward.11} parent=5 // pred_check_branch
      %740 = sbr.rel (%p738) target = $region52
    $region51: #{gpt2_probe_forward.11} parent=5 // pred_region
      %s741 = ssub.s32 %s10, 2
      // Predicated region
      $region53: #{gpt2_probe_forward.11} parent=51 // pred_check
        %p742 = pneg %p187
      $region54: #{gpt2_probe_forward.11} parent=51 // pred_check_branch
        %744 = sbr.rel (%p742) target = $region56
      $region55: #{gpt2_probe_forward.11} parent=51 // pred_region
        %p745 = scmp.lt.s32.totalorder %s25, 1
        %s746 = scalar_select %p745, %s25, 1
        %p747 = scmp.lt.s32.totalorder %s27, 0
        %s748 = scalar_select %p747, %s27, 0
        %p749 = scmp.lt.s32.totalorder %s26, 0
        %s750 = scalar_select %p749, %s26, 0
        %s751 = sadd.s32 %s750, %s748
        %s752 = sadd.s32 %s751, %s746
        %s753 = smul.addr %s752, 4
        %s754 = scalar_lea.vmem %s4, %s753
      $region56: #{gpt2_probe_forward.11} parent=51 // pred_fallthru
        _
    $region52: #{gpt2_probe_forward.11} parent=5 // pred_fallthru
      _
  $region6: #{gpt2_probe_forward.11} parent=0 // loop_footer
    %s14 = sadd.s32 1, %s10
  $region7: #{gpt2_probe_forward.11} parent=0 // loop_footer_branch
    %9 = sbr.rel target = $region3
  $region8: #{gpt2_probe_forward.11} parent=0 // loop_exit
    _

// kernel: gpt2_probe_forward.14
$region0: #{gpt2_probe_forward.14}
  #allocation0 [shape = 'u32[]', space=smem, size = 0x4, offset = 0x4, fixed_abs, tag = 'smem constant byte address 0x4 - core index']
  #allocation1 [shape = 'u32[144,128]{1,0:T(1,128)}', space=vmem, size = 0x12000, scoped, tag = 'internal scratch']
  %s0 = inlined_call_operand.vmem [shape: bf16[16,128], index: 0, kind: input, shape index: {}]
  %s1 = inlined_call_operand.vmem [shape: bf16[128,32], index: 1, kind: input, shape index: {}]
  %s2 = inlined_call_operand.vmem [shape: f32[1,32], index: 2, kind: input, shape index: {}]
  %s3 = inlined_call_operand.vmem [shape: bf16[16,32], index: 3, kind: input, shape index: {}]
  %s4 = inlined_call_operand.vmem [shape: bf16[16,32], index: 4, kind: output, shape index: {}]
  %s5 = sld [smem:[#allocation0]]
  $region26: #{gpt2_probe_forward.14} parent=0
    _
  %s7 = ssub.s32 1, %s5
  %s8 = scalar_select 0, %s7, %s5
  // Predicated region
  $region2: #{gpt2_probe_forward.14} parent=0 // pred_check
    _
  $region3: #{gpt2_probe_forward.14} parent=0 // pred_check_branch
    %10 = sbr.rel (0) target = $region5
  $region4: #{gpt2_probe_forward.14} parent=0 // pred_region
    _
  $region5: #{gpt2_probe_forward.14} parent=0 // pred_fallthru
    _
  // Predicated region
  $region6: #{gpt2_probe_forward.14} parent=0 // pred_check
    _
  $region7: #{gpt2_probe_forward.14} parent=0 // pred_check_branch
    %12 = sbr.rel (0) target = $region9
  $region8: #{gpt2_probe_forward.14} parent=0 // pred_region
    _
  $region9: #{gpt2_probe_forward.14} parent=0 // pred_fallthru
    _
  // Predicated region
  $region10: #{gpt2_probe_forward.14} parent=0 // pred_check
    _
  $region11: #{gpt2_probe_forward.14} parent=0 // pred_check_branch
    %14 = sbr.rel (0) target = $region13
  $region12: #{gpt2_probe_forward.14} parent=0 // pred_region
    _
  $region13: #{gpt2_probe_forward.14} parent=0 // pred_fallthru
    _
  // Predicated region
  $region14: #{gpt2_probe_forward.14} parent=0 // pred_check
    _
  $region15: #{gpt2_probe_forward.14} parent=0 // pred_check_branch
    %16 = sbr.rel (0) target = $region17
  $region16: #{gpt2_probe_forward.14} parent=0 // pred_region
    _
  $region17: #{gpt2_probe_forward.14} parent=0 // pred_fallthru
    _
  %v18 = vld [vmem:[%s0] sm:$0xf]
  %v19 = vld [vmem:[%s0 + $0x4] sm:$0xf]
  %v20 = vld [vmem:[%s1] sm:$0xf]
  %v21 = vld [vmem:[%s1 + $0x4] sm:$0xf]
  %v22 = vld [vmem:[%s1 + $0x8] sm:$0xf]
  %v23 = vld [vmem:[%s1 + $0xc] sm:$0xf]
  %v24 = vld [vmem:[%s1 + $0x10] sm:$0xf]
  %v25 = vld [vmem:[%s1 + $0x14] sm:$0xf]
  %v26 = vld [vmem:[%s1 + $0x18] sm:$0xf]
  %v27 = vld [vmem:[%s1 + $0x1c] sm:$0xf]
  %v28 = vld [vmem:[%s1 + $0x20] sm:$0xf]
  %v29 = vld [vmem:[%s1 + $0x24] sm:$0xf]
  %v30 = vld [vmem:[%s1 + $0x28] sm:$0xf]
  %v31 = vld [vmem:[%s1 + $0x2c] sm:$0xf]
  %v32 = vld [vmem:[%s1 + $0x30] sm:$0xf]
  %v33 = vld [vmem:[%s1 + $0x34] sm:$0xf]
  %v34 = vld [vmem:[%s1 + $0x38] sm:$0xf]
  %v35 = vld [vmem:[%s1 + $0x3c] sm:$0xf]
  %v36 = vld [vmem:[%s2] sm:$0x1]
  %v38 = vlaneseq
  %v39 = vshrl.u32 %v38, 7
  %v40 = vsub.s32 0, %v39
  %v41 = vrot.slane %v36, %v40
  %v45 = vunpack.c.l.b16 %v18
  %v46 = vunpack.c.l.b16 %v19
  %v47 = vpack.c.b16 %v46, %v45
  %v65 = vunpack.c.l.b16 %v20
  %v66 = vunpack.c.l.b16 %v21
  %v67 = vunpack.c.l.b16 %v22
  %v68 = vunpack.c.l.b16 %v23
  %v69 = vunpack.c.l.b16 %v24
  %v70 = vunpack.c.l.b16 %v25
  %v71 = vunpack.c.l.b16 %v26
  %v72 = vunpack.c.l.b16 %v27
  %v73 = vunpack.c.l.b16 %v28
  %v74 = vunpack.c.l.b16 %v29
  %v75 = vunpack.c.l.b16 %v30
  %v76 = vunpack.c.l.b16 %v31
  %v77 = vunpack.c.l.b16 %v32
  %v78 = vunpack.c.l.b16 %v33
  %v79 = vunpack.c.l.b16 %v34
  %v80 = vunpack.c.l.b16 %v35
  %v81 = vpack.c.b16 %v66, %v65
  %v82 = vpack.c.b16 %v68, %v67
  %v83 = vpack.c.b16 %v70, %v69
  %v84 = vpack.c.b16 %v72, %v71
  %v85 = vpack.c.b16 %v74, %v73
  %v86 = vpack.c.b16 %v76, %v75
  %v87 = vpack.c.b16 %v78, %v77
  %v88 = vpack.c.b16 %v80, %v79
  %97 = vmatprep.subr.bf16.mxu0 0
  %98 = vmatpush1.bf16.msra.mxu0 %v81
  %99 = vmatprep.subr.bf16.mxu0 0
  %100 = vmatpush1.bf16.msra.mxu0 %v82
  %101 = vmatprep.subr.bf16.mxu0 0
  %102 = vmatpush1.bf16.msra.mxu0 %v83
  %103 = vmatprep.subr.bf16.mxu0 0
  %104 = vmatpush1.bf16.msra.mxu0 %v84
  %105 = vmatprep.subr.bf16.mxu0 0
  %106 = vmatpush1.bf16.msra.mxu0 %v85
  %107 = vmatprep.subr.bf16.mxu0 0
  %108 = vmatpush1.bf16.msra.mxu0 %v86
  %109 = vmatprep.subr.bf16.mxu0 0
  %110 = vmatpush1.bf16.msra.mxu0 %v87
  %111 = vmatprep.subr.bf16.mxu0 0
  %112 = vmatpush1.bf16.msra.mxu0 %v88
  %113 = vmatprep.subr.bf16.mxu0 0
  %114 = vmatpush1.bf16.msra.mxu0 0
  %115 = vmatprep.subr.bf16.mxu0 0
  %116 = vmatpush1.bf16.msra.mxu0 0
  %117 = vmatprep.subr.bf16.mxu0 0
  %118 = vmatpush1.bf16.msra.mxu0 0
  %119 = vmatprep.subr.bf16.mxu0 0
  %120 = vmatpush1.bf16.msra.mxu0 0
  %121 = vmatprep.subr.bf16.mxu0 0
  %122 = vmatpush1.bf16.msra.mxu0 0
  %123 = vmatprep.subr.bf16.mxu0 0
  %124 = vmatpush1.bf16.msra.mxu0 0
  %125 = vmatprep.subr.bf16.mxu0 0
  %126 = vmatpush1.bf16.msra.mxu0 0
  %127 = vmatprep.subr.bf16.mxu0 0
  %128 = vmatpush1.bf16.msra.mxu0 0
  %129 = vmatprep.mubr.bf16.mxu0 0
  %130 = vmatmul.mubr.bf16.gmra.mrb[0].mxu0 %v47
  %v131 = vpop.f32.mrb[0].mxu0
  %v132 = vadd.f32 %v41, %v131
  %v133 = vpop.f32.mrb[0].mxu0
  %v134 = vpop.f32.mrb[0].mxu0
  %v135 = vadd.f32 %v41, %v134
  %v136 = vpop.f32.mrb[0].mxu0
  %137 = vdwg.mxu0
  %v138 = vld [vmem:[%s3] sm:$0xf]
  %v139 = vld [vmem:[%s3 + $0x4] sm:$0xf]
  %v140 = vunpack.c.l.bf16 %v138
  %v141 = vunpack.c.l.bf16 %v139
  %v142 = vadd.f32 %v132, %v140
  %v143 = vadd.f32 %v135, %v141
  %v144 = vpack.c.bf16 %v143, %v142
  %v146 = vunpack.c.l.b16 %v144
  %v147 = vunpack.c.h.b16 %v144
  %v148 = vpack.c.b16 %v146, %v146
  %v149 = vpack.c.b16 %v147, %v147
  %vm152 = vcmask 257024
  %153 = vst.msk [vmem:[%s4] sm:$0xf] %vm152, %v148
  %154 = vst.msk [vmem:[%s4 + $0x4] sm:$0xf] %vm152, %v149
  // Predicated region
  $region18: #{gpt2_probe_forward.14} parent=0 // pred_check
    _
  $region19: #{gpt2_probe_forward.14} parent=0 // pred_check_branch
    %156 = sbr.rel (0) target = $region21
  $region20: #{gpt2_probe_forward.14} parent=0 // pred_region
    _
  $region21: #{gpt2_probe_forward.14} parent=0 // pred_fallthru
    _
  // Predicated region
  $region22: #{gpt2_probe_forward.14} parent=0 // pred_check
    _
  $region23: #{gpt2_probe_forward.14} parent=0 // pred_check_branch
    %158 = sbr.rel (0) target = $region25
  $region24: #{gpt2_probe_forward.14} parent=0 // pred_region
    _
  $region25: #{gpt2_probe_forward.14} parent=0 // pred_fallthru
    _

</llo_original>
